<compile_context>
chip_gen: v7x
topology: tpu7x:2x2x1
jax: 0.10.0
libtpu: 0.0.40
codegen_flags: <defaults>
</compile_context>

<pallas_src>
import functools

import jax
import jax.numpy as jnp
from jax.experimental import pallas as pl
from jax.experimental.pallas import tpu as pltpu

LEAKY_SLOPE = 0.01   # torch.nn.LeakyReLU default
LN_EPS = 1e-5        # torch.nn.LayerNorm default eps


def _round_up(v, m):
    return (v + m - 1) // m * m


# -----------------------------------------------------------------------------
# Kernel
# -----------------------------------------------------------------------------
def team_gnn_kernel(adj_ref, dinv_ref, x_ref, w1_ref, w2_ref, aux_ref, seg_ref,
                    o_ref, *, inv_hidden):
    """Fused 2-layer GCN + LayerNorm + LeakyReLU + mean pool, all VMEM resident.

    adj_ref : (N, N)   bf16  raw adjacency + self loops (small exact integers)
    dinv_ref: (N, 1)   f32   D^-1/2 of (A + I); 0 for zero-degree/padded rows
    x_ref   : (N, C)   bf16  node features (feature lanes zero-padded to 128)
    w1_ref  : (C, H)   bf16
    w2_ref  : (H, H)   bf16
    aux_ref : (8, H)   f32   rows = [b1, g1, be1, b2, g2, be2, 0, 0]
    seg_ref : (G, N)   bf16  un-normalized one-hot graph-membership matrix
    o_ref   : (G, H)   f32   pooled graph embeddings (lane-dense)
    """
    adj = adj_ref[...]                       # bf16, exact 0/1/2 entries
    dinv = dinv_ref[...]                     # (N, 1) f32

    aux = aux_ref[...]
    b1, g1, be1 = aux[0:1, :], aux[1:2, :], aux[2:3, :]
    b2, g2, be2 = aux[3:4, :], aux[4:5, :], aux[5:6, :]

    def gcn_norm_act(h_bf16, w_ref, b, g, be):
        # X @ W on the MXU (bf16 operands, f32 accumulation).
        xw = jnp.dot(h_bf16, w_ref[...], preferred_element_type=jnp.float32)
        # A_hat @ (XW) with A_hat = D^-1/2 (A+I) D^-1/2 folded into two row
        # scalings (VPU) around a raw-adjacency matmul (MXU).
        m = (dinv * xw).astype(jnp.bfloat16)
        h = dinv * jnp.dot(adj, m, preferred_element_type=jnp.float32) + b
        # LayerNorm over the *real* hidden lanes (padded lanes of h are zero;
        # padded gamma/beta lanes are zero, so padded lanes stay zero).
        mu = jnp.sum(h, axis=-1, keepdims=True) * inv_hidden
        var = jnp.sum(h * h, axis=-1, keepdims=True) * inv_hidden - mu * mu
        hn = (h - mu) * jax.lax.rsqrt(var + LN_EPS) * g + be
        # LeakyReLU.
        return jnp.where(hn > 0, hn, LEAKY_SLOPE * hn)

    h1 = gcn_norm_act(x_ref[...], w1_ref, b1, g1, be1)
    h2 = gcn_norm_act(h1.astype(jnp.bfloat16), w2_ref, b2, g2, be2)

    # Dropout(p=0.2): eval-mode identity.
    # global_mean_pool: segment-sum on the MXU, 1/count scaling on the VPU.
    seg = seg_ref[...]
    counts = jnp.sum(seg.astype(jnp.float32), axis=-1, keepdims=True)
    inv_counts = 1.0 / jnp.maximum(counts, 1.0)
    pooled = jnp.dot(seg, h2.astype(jnp.bfloat16),
                     preferred_element_type=jnp.float32)
    o_ref[...] = pooled * inv_counts


# -----------------------------------------------------------------------------
# Wrapper: pad/pack operands, build raw adjacency + dinv, call the kernel.
# -----------------------------------------------------------------------------
@functools.partial(jax.jit, static_argnames=("num_graphs",))
def team_gnn_forward(x, edge_index, batch, params, num_graphs):
    n, cin = x.shape
    hidden = params["w1"].shape[1]

    n_pad = _round_up(n, 128)
    c_pad = _round_up(cin, 128)
    h_pad = _round_up(hidden, 128)
    g_pad = _round_up(num_graphs, 8)

    src, dst = edge_index[0], edge_index[1]
    # A[i, j] = multiplicity of edge j -> i (duplicates summed, like PyG), plus
    # a self loop on every real node.  Padded nodes have zero degree.
    adj = jnp.zeros((n_pad, n_pad), jnp.float32).at[dst, src].add(1.0)
    adj = adj.at[jnp.arange(n), jnp.arange(n)].add(1.0)
    deg = jnp.sum(adj, axis=1, keepdims=True)
    dinv = jnp.where(deg > 0, jax.lax.rsqrt(deg), 0.0)            # (n_pad, 1) f32

    # Un-normalized graph-membership one-hot; counts recovered inside kernel.
    onehot = (batch[None, :] ==
              jnp.arange(g_pad, dtype=batch.dtype)[:, None]).astype(jnp.float32)
    seg = jnp.pad(onehot, ((0, 0), (0, n_pad - n))).astype(jnp.bfloat16)

    # Lane-dense, bf16 operands for the MXU.
    adj_bf = adj.astype(jnp.bfloat16)
    x_pad = jnp.pad(x.astype(jnp.float32),
                    ((0, n_pad - n), (0, c_pad - cin))).astype(jnp.bfloat16)
    w1_pad = jnp.pad(params["w1"],
                     ((0, c_pad - cin), (0, h_pad - hidden))).astype(jnp.bfloat16)
    w2_pad = jnp.pad(params["w2"],
                     ((0, h_pad - hidden), (0, h_pad - hidden))).astype(jnp.bfloat16)

    # Pack the six (1, hidden) params into one (8, h_pad) slab -> single DMA.
    aux = jnp.concatenate(
        [params["b1"], params["gamma1"], params["beta1"],
         params["b2"], params["gamma2"], params["beta2"]], axis=0)
    aux = jnp.pad(aux, ((0, 8 - aux.shape[0]), (0, h_pad - hidden)))

    vmem = pl.BlockSpec(memory_space=pltpu.MemorySpace.VMEM)
    kernel = functools.partial(team_gnn_kernel, inv_hidden=1.0 / hidden)
    out = pl.pallas_call(
        kernel,
        out_shape=jax.ShapeDtypeStruct((g_pad, h_pad), jnp.float32),
        in_specs=[vmem] * 7,
        out_specs=vmem,
    )(adj_bf, dinv, x_pad, w1_pad, w2_pad, aux, seg)
    return out[:num_graphs, :hidden]


# -----------------------------------------------------------------------------
# Params + references
# -----------------------------------------------------------------------------
def init_params(key, in_channels, hidden_channels):
    ks = jax.random.split(key, 8)
    w1 = jax.random.normal(ks[0], (in_channels, hidden_channels), jnp.float32)
    w1 = w1 * jnp.sqrt(2.0 / (in_channels + hidden_channels))
    w2 = jax.random.normal(ks[1], (hidden_channels, hidden_channels), jnp.float32)
    w2 = w2 * jnp.sqrt(1.0 / hidden_channels)
    # Non-trivial affine params so row-packing mistakes are visible in the check.
    return {
        "w1": w1,
        "b1": 0.1 * jax.random.normal(ks[2], (1, hidden_channels), jnp.float32),
        "gamma1": 1.0 + 0.1 * jax.random.normal(ks[3], (1, hidden_channels), jnp.float32),
        "beta1": 0.1 * jax.random.normal(ks[4], (1, hidden_channels), jnp.float32),
        "w2": w2,
        "b2": 0.1 * jax.random.normal(ks[5], (1, hidden_channels), jnp.float32),
        "gamma2": 1.0 + 0.1 * jax.random.normal(ks[6], (1, hidden_channels), jnp.float32),
        "beta2": 0.1 * jax.random.normal(ks[7], (1, hidden_channels), jnp.float32),
    }


def _reference(x, edge_index, batch, params, num_graphs, *, bf16_ops):
    """Pure-JAX reference.  bf16_ops=True mirrors the kernel's bf16 MXU operand
    casts (f32 accumulation); bf16_ops=False is the full-f32 module semantics."""
    f32 = jnp.float32

    def mm(a, b):
        if bf16_ops:
            return jnp.dot(a.astype(jnp.bfloat16), b.astype(jnp.bfloat16),
                           preferred_element_type=f32)
        return jnp.dot(a, b, preferred_element_type=f32)

    n = x.shape[0]
    src, dst = edge_index[0], edge_index[1]
    adj = jnp.zeros((n, n), f32).at[dst, src].add(1.0)
    adj = adj.at[jnp.arange(n), jnp.arange(n)].add(1.0)
    deg = jnp.sum(adj, axis=1, keepdims=True)
    dinv = jnp.where(deg > 0, jax.lax.rsqrt(deg), 0.0)

    def layer(h, w, b, g, be):
        xw = mm(h, w)
        h = dinv * mm(adj, dinv * xw) + b
        mu = jnp.mean(h, axis=-1, keepdims=True)
        var = jnp.mean(h * h, axis=-1, keepdims=True) - mu * mu
        hn = (h - mu) * jax.lax.rsqrt(var + LN_EPS) * g + be
        return jnp.where(hn > 0, hn, LEAKY_SLOPE * hn)

    h = layer(x.astype(f32), params["w1"], params["b1"],
              params["gamma1"], params["beta1"])
    h = layer(h, params["w2"], params["b2"],
              params["gamma2"], params["beta2"])

    onehot = (batch[None, :] ==
              jnp.arange(num_graphs, dtype=batch.dtype)[:, None]).astype(f32)
    counts = jnp.maximum(jnp.sum(onehot, axis=1, keepdims=True), 1.0)
    pooled = mm(onehot, h) if bf16_ops else onehot @ h
    return pooled / counts


# -----------------------------------------------------------------------------
# Demo
# -----------------------------------------------------------------------------
if __name__ == "__main__":
    IN_CHANNELS = 8
    HIDDEN = 32
    NODES_PER_GRAPH = 8
    NUM_GRAPHS = 16                       # 16 graphs x 8 nodes -> N = 128 rows
    N = NODES_PER_GRAPH * NUM_GRAPHS

    key = jax.random.PRNGKey(0)
    kx, kp = jax.random.split(key)

    x = jax.random.normal(kx, (N, IN_CHANNELS), jnp.float32)
    batch = jnp.repeat(jnp.arange(NUM_GRAPHS, dtype=jnp.int32), NODES_PER_GRAPH)

    # Deterministic edges: a bidirectional ring inside each graph.
    srcs, dsts = [], []
    for g in range(NUM_GRAPHS):
        base = g * NODES_PER_GRAPH
        for i in range(NODES_PER_GRAPH):
            a = base + i
            b = base + (i + 1) % NODES_PER_GRAPH
            srcs += [a, b]
            dsts += [b, a]
    edge_index = jnp.array([srcs, dsts], dtype=jnp.int32)   # (2, 256)

    params = init_params(kp, IN_CHANNELS, HIDDEN)

    out = jax.block_until_ready(
        team_gnn_forward(x, edge_index, batch, params, NUM_GRAPHS))
    assert out.shape == (NUM_GRAPHS, HIDDEN), out.shape

    # Strict check against a reference that mirrors the bf16 MXU operand casts.
    ref_bf16 = _reference(x, edge_index, batch, params, NUM_GRAPHS, bf16_ops=True)
    assert jnp.allclose(out, ref_bf16, atol=2e-2, rtol=2e-2), \
        "mismatch vs bf16-mirrored reference"

    # Loose semantic check against the full-f32 module math (bf16 quantization
    # of the MXU operands accounts for the tolerance).
    ref_f32 = _reference(x, edge_index, batch, params, NUM_GRAPHS, bf16_ops=False)
    assert jnp.allclose(out, ref_f32, atol=1e-1, rtol=1e-1), \
        "mismatch vs f32 reference"

    print("KERNEL_OK")
</pallas_src>

<mosaic_0001>
module attributes {stable_mosaic.version = 11 : i64} {
  func.func private @main(%arg0: i32) attributes {dimension_semantics = [#tpu.dimension_semantics<core_parallel>], iteration_bounds = array<i64: 2>, tpu.core_type = #tpu.core_type<sc_scalar_subcore>, window_params = []} {
    return
  }
}

module attributes {stable_mosaic.version = 11 : i64} {
  func.func private @main(%arg0: i32) attributes {dimension_semantics = [#tpu.dimension_semantics<core_parallel>], iteration_bounds = array<i64: 2>, tpu.core_type = #tpu.core_type<sc_scalar_subcore>, window_params = []} {
    return
  }
}

module attributes {stable_mosaic.version = 11 : i64} {
  func.func @team_gnn_kernel(%arg0: memref<128x128xbf16, #tpu.memory_space<vmem>>, %arg1: memref<128x1xf32, #tpu.memory_space<vmem>>, %arg2: memref<128x128xbf16, #tpu.memory_space<vmem>>, %arg3: memref<128x128xbf16, #tpu.memory_space<vmem>>, %arg4: memref<128x128xbf16, #tpu.memory_space<vmem>>, %arg5: memref<8x128xf32, #tpu.memory_space<vmem>>, %arg6: memref<16x128xbf16, #tpu.memory_space<vmem>>, %arg7: memref<16x128xf32, #tpu.memory_space<vmem>>) attributes {dimension_semantics = [], scalar_prefetch = 0 : i64, scratch_operands = 0 : i64, tpu.core_type = #tpu.core_type<tc>} {
    %c0 = arith.constant 0 : index
    %c0_0 = arith.constant 0 : index
    %0 = vector.load %arg0[%c0, %c0_0] : memref<128x128xbf16, #tpu.memory_space<vmem>>, vector<128x128xbf16>
    %c0_1 = arith.constant 0 : index
    %c0_2 = arith.constant 0 : index
    %1 = vector.load %arg1[%c0_1, %c0_2] : memref<128x1xf32, #tpu.memory_space<vmem>>, vector<128x1xf32>
    %c0_3 = arith.constant 0 : index
    %c0_4 = arith.constant 0 : index
    %2 = vector.load %arg5[%c0_3, %c0_4] : memref<8x128xf32, #tpu.memory_space<vmem>>, vector<8x128xf32>
    %3 = vector.extract_strided_slice %2 {offsets = [0, 0], sizes = [1, 128], strides = [1, 1]} : vector<8x128xf32> to vector<1x128xf32>
    %4 = vector.extract_strided_slice %2 {offsets = [1, 0], sizes = [1, 128], strides = [1, 1]} : vector<8x128xf32> to vector<1x128xf32>
    %5 = vector.extract_strided_slice %2 {offsets = [2, 0], sizes = [1, 128], strides = [1, 1]} : vector<8x128xf32> to vector<1x128xf32>
    %6 = vector.extract_strided_slice %2 {offsets = [3, 0], sizes = [1, 128], strides = [1, 1]} : vector<8x128xf32> to vector<1x128xf32>
    %7 = vector.extract_strided_slice %2 {offsets = [4, 0], sizes = [1, 128], strides = [1, 1]} : vector<8x128xf32> to vector<1x128xf32>
    %8 = vector.extract_strided_slice %2 {offsets = [5, 0], sizes = [1, 128], strides = [1, 1]} : vector<8x128xf32> to vector<1x128xf32>
    %c0_5 = arith.constant 0 : index
    %c0_6 = arith.constant 0 : index
    %9 = vector.load %arg2[%c0_5, %c0_6] : memref<128x128xbf16, #tpu.memory_space<vmem>>, vector<128x128xbf16>
    %c0_7 = arith.constant 0 : index
    %c0_8 = arith.constant 0 : index
    %10 = vector.load %arg3[%c0_7, %c0_8] : memref<128x128xbf16, #tpu.memory_space<vmem>>, vector<128x128xbf16>
    %cst = arith.constant dense<0.000000e+00> : vector<128x128xf32>
    %11 = tpu.matmul %9, %10, %cst {dimension_numbers = #tpu.dot_dimension_numbers<[1], [0], [0], [1], [0, 0, 1, 1], [], []>} : vector<128x128xbf16>, vector<128x128xbf16>, vector<128x128xf32> -> vector<128x128xf32>
    %12 = vector.broadcast %1 : vector<128x1xf32> to vector<128x128xf32>
    %13 = arith.mulf %12, %11 : vector<128x128xf32>
    %14 = arith.truncf %13 : vector<128x128xf32> to vector<128x128xbf16>
    %cst_9 = arith.constant dense<0.000000e+00> : vector<128x128xf32>
    %15 = tpu.matmul %0, %14, %cst_9 {dimension_numbers = #tpu.dot_dimension_numbers<[1], [0], [0], [1], [0, 0, 1, 1], [], []>} : vector<128x128xbf16>, vector<128x128xbf16>, vector<128x128xf32> -> vector<128x128xf32>
    %16 = vector.broadcast %1 : vector<128x1xf32> to vector<128x128xf32>
    %17 = arith.mulf %16, %15 : vector<128x128xf32>
    %18 = vector.broadcast %3 : vector<1x128xf32> to vector<128x128xf32>
    %19 = arith.addf %17, %18 : vector<128x128xf32>
    %cst_10 = arith.constant dense<0.000000e+00> : vector<128xf32>
    %20 = vector.multi_reduction <add>, %19, %cst_10 [1] : vector<128x128xf32> to vector<128xf32>
    %21 = vector.shape_cast %20 : vector<128xf32> to vector<128x1xf32>
    %cst_11 = arith.constant 3.125000e-02 : f32
    %22 = vector.broadcast %cst_11 : f32 to vector<128x1xf32>
    %23 = arith.mulf %21, %22 : vector<128x1xf32>
    %24 = arith.mulf %19, %19 : vector<128x128xf32>
    %cst_12 = arith.constant dense<0.000000e+00> : vector<128xf32>
    %25 = vector.multi_reduction <add>, %24, %cst_12 [1] : vector<128x128xf32> to vector<128xf32>
    %26 = vector.shape_cast %25 : vector<128xf32> to vector<128x1xf32>
    %cst_13 = arith.constant 3.125000e-02 : f32
    %27 = vector.broadcast %cst_13 : f32 to vector<128x1xf32>
    %28 = arith.mulf %26, %27 : vector<128x1xf32>
    %29 = arith.mulf %23, %23 : vector<128x1xf32>
    %30 = arith.subf %28, %29 : vector<128x1xf32>
    %31 = vector.broadcast %23 : vector<128x1xf32> to vector<128x128xf32>
    %32 = arith.subf %19, %31 : vector<128x128xf32>
    %cst_14 = arith.constant 9.99999974E-6 : f32
    %33 = vector.broadcast %cst_14 : f32 to vector<128x1xf32>
    %34 = arith.addf %30, %33 : vector<128x1xf32>
    %35 = math.rsqrt %34 : vector<128x1xf32>
    %36 = vector.broadcast %35 : vector<128x1xf32> to vector<128x128xf32>
    %37 = arith.mulf %32, %36 : vector<128x128xf32>
    %38 = vector.broadcast %4 : vector<1x128xf32> to vector<128x128xf32>
    %39 = arith.mulf %37, %38 : vector<128x128xf32>
    %40 = vector.broadcast %5 : vector<1x128xf32> to vector<128x128xf32>
    %41 = arith.addf %39, %40 : vector<128x128xf32>
    %cst_15 = arith.constant 0.000000e+00 : f32
    %42 = vector.broadcast %cst_15 : f32 to vector<128x128xf32>
    %43 = arith.cmpf ogt, %41, %42 : vector<128x128xf32>
    %cst_16 = arith.constant 0.00999999977 : f32
    %44 = vector.broadcast %cst_16 : f32 to vector<128x128xf32>
    %45 = arith.mulf %44, %41 : vector<128x128xf32>
    %46 = arith.select %43, %41, %45 : vector<128x128xi1>, vector<128x128xf32>
    %47 = arith.truncf %46 : vector<128x128xf32> to vector<128x128xbf16>
    %c0_17 = arith.constant 0 : index
    %c0_18 = arith.constant 0 : index
    %48 = vector.load %arg4[%c0_17, %c0_18] : memref<128x128xbf16, #tpu.memory_space<vmem>>, vector<128x128xbf16>
    %cst_19 = arith.constant dense<0.000000e+00> : vector<128x128xf32>
    %49 = tpu.matmul %47, %48, %cst_19 {dimension_numbers = #tpu.dot_dimension_numbers<[1], [0], [0], [1], [0, 0, 1, 1], [], []>} : vector<128x128xbf16>, vector<128x128xbf16>, vector<128x128xf32> -> vector<128x128xf32>
    %50 = vector.broadcast %1 : vector<128x1xf32> to vector<128x128xf32>
    %51 = arith.mulf %50, %49 : vector<128x128xf32>
    %52 = arith.truncf %51 : vector<128x128xf32> to vector<128x128xbf16>
    %cst_20 = arith.constant dense<0.000000e+00> : vector<128x128xf32>
    %53 = tpu.matmul %0, %52, %cst_20 {dimension_numbers = #tpu.dot_dimension_numbers<[1], [0], [0], [1], [0, 0, 1, 1], [], []>} : vector<128x128xbf16>, vector<128x128xbf16>, vector<128x128xf32> -> vector<128x128xf32>
    %54 = vector.broadcast %1 : vector<128x1xf32> to vector<128x128xf32>
    %55 = arith.mulf %54, %53 : vector<128x128xf32>
    %56 = vector.broadcast %6 : vector<1x128xf32> to vector<128x128xf32>
    %57 = arith.addf %55, %56 : vector<128x128xf32>
    %cst_21 = arith.constant dense<0.000000e+00> : vector<128xf32>
    %58 = vector.multi_reduction <add>, %57, %cst_21 [1] : vector<128x128xf32> to vector<128xf32>
    %59 = vector.shape_cast %58 : vector<128xf32> to vector<128x1xf32>
    %cst_22 = arith.constant 3.125000e-02 : f32
    %60 = vector.broadcast %cst_22 : f32 to vector<128x1xf32>
    %61 = arith.mulf %59, %60 : vector<128x1xf32>
    %62 = arith.mulf %57, %57 : vector<128x128xf32>
    %cst_23 = arith.constant dense<0.000000e+00> : vector<128xf32>
    %63 = vector.multi_reduction <add>, %62, %cst_23 [1] : vector<128x128xf32> to vector<128xf32>
    %64 = vector.shape_cast %63 : vector<128xf32> to vector<128x1xf32>
    %cst_24 = arith.constant 3.125000e-02 : f32
    %65 = vector.broadcast %cst_24 : f32 to vector<128x1xf32>
    %66 = arith.mulf %64, %65 : vector<128x1xf32>
    %67 = arith.mulf %61, %61 : vector<128x1xf32>
    %68 = arith.subf %66, %67 : vector<128x1xf32>
    %69 = vector.broadcast %61 : vector<128x1xf32> to vector<128x128xf32>
    %70 = arith.subf %57, %69 : vector<128x128xf32>
    %cst_25 = arith.constant 9.99999974E-6 : f32
    %71 = vector.broadcast %cst_25 : f32 to vector<128x1xf32>
    %72 = arith.addf %68, %71 : vector<128x1xf32>
    %73 = math.rsqrt %72 : vector<128x1xf32>
    %74 = vector.broadcast %73 : vector<128x1xf32> to vector<128x128xf32>
    %75 = arith.mulf %70, %74 : vector<128x128xf32>
    %76 = vector.broadcast %7 : vector<1x128xf32> to vector<128x128xf32>
    %77 = arith.mulf %75, %76 : vector<128x128xf32>
    %78 = vector.broadcast %8 : vector<1x128xf32> to vector<128x128xf32>
    %79 = arith.addf %77, %78 : vector<128x128xf32>
    %cst_26 = arith.constant 0.000000e+00 : f32
    %80 = vector.broadcast %cst_26 : f32 to vector<128x128xf32>
    %81 = arith.cmpf ogt, %79, %80 : vector<128x128xf32>
    %cst_27 = arith.constant 0.00999999977 : f32
    %82 = vector.broadcast %cst_27 : f32 to vector<128x128xf32>
    %83 = arith.mulf %82, %79 : vector<128x128xf32>
    %84 = arith.select %81, %79, %83 : vector<128x128xi1>, vector<128x128xf32>
    %c0_28 = arith.constant 0 : index
    %c0_29 = arith.constant 0 : index
    %85 = vector.load %arg6[%c0_28, %c0_29] : memref<16x128xbf16, #tpu.memory_space<vmem>>, vector<16x128xbf16>
    %86 = arith.extf %85 : vector<16x128xbf16> to vector<16x128xf32>
    %cst_30 = arith.constant dense<0.000000e+00> : vector<16xf32>
    %87 = vector.multi_reduction <add>, %86, %cst_30 [1] : vector<16x128xf32> to vector<16xf32>
    %88 = vector.shape_cast %87 : vector<16xf32> to vector<16x1xf32>
    %cst_31 = arith.constant 1.000000e+00 : f32
    %89 = vector.broadcast %cst_31 : f32 to vector<16x1xf32>
    %90 = arith.maximumf %88, %89 : vector<16x1xf32>
    %cst_32 = arith.constant 1.000000e+00 : f32
    %91 = vector.broadcast %cst_32 : f32 to vector<16x1xf32>
    %92 = arith.divf %91, %90 : vector<16x1xf32>
    %93 = arith.truncf %84 : vector<128x128xf32> to vector<128x128xbf16>
    %cst_33 = arith.constant dense<0.000000e+00> : vector<16x128xf32>
    %94 = tpu.matmul %85, %93, %cst_33 {dimension_numbers = #tpu.dot_dimension_numbers<[1], [0], [0], [1], [0, 0, 1, 1], [], []>} : vector<16x128xbf16>, vector<128x128xbf16>, vector<16x128xf32> -> vector<16x128xf32>
    %95 = vector.broadcast %92 : vector<16x1xf32> to vector<16x128xf32>
    %96 = arith.mulf %94, %95 : vector<16x128xf32>
    %c0_34 = arith.constant 0 : index
    %c0_35 = arith.constant 0 : index
    %97 = vector.load %arg7[%c0_34, %c0_35] : memref<16x128xf32, #tpu.memory_space<vmem>>, vector<16x128xf32>
    tpu.vector_store %arg7[%c0_34, %c0_35], %96 {strides = array<i32>} : memref<16x128xf32, #tpu.memory_space<vmem>>, vector<16x128xf32>,
    return
  }
}

</mosaic_0001>

<llo_original>
// kernel: team_gnn_forward.1
$region0: #{team_gnn_forward.1}
  #allocation0 [shape = 'u32[]', space=smem, size = 0x4, offset = 0x4, fixed_abs, tag = 'smem constant byte address 0x4 - core index']
  #allocation1 [shape = 'u32[144,128]{1,0:T(1,128)}', space=vmem, size = 0x12000, scoped, tag = 'internal scratch']
  %s0 = inlined_call_operand.vmem [shape: bf16[128,128], index: 0, kind: input, shape index: {}]
  %s1 = inlined_call_operand.vmem [shape: f32[128,1], index: 1, kind: input, shape index: {}]
  %s2 = inlined_call_operand.vmem [shape: bf16[128,128], index: 2, kind: input, shape index: {}]
  %s3 = inlined_call_operand.vmem [shape: bf16[128,128], index: 3, kind: input, shape index: {}]
  %s4 = inlined_call_operand.vmem [shape: bf16[128,128], index: 4, kind: input, shape index: {}]
  %s5 = inlined_call_operand.vmem [shape: f32[8,128], index: 5, kind: input, shape index: {}]
  %s6 = inlined_call_operand.vmem [shape: bf16[16,128], index: 6, kind: input, shape index: {}]
  %s7 = inlined_call_operand.hbm [shape: f32[16,128], index: 7, kind: output, shape index: {}]
  %s8 = sld [smem:[#allocation0]]
  $region38: #{team_gnn_forward.1} parent=0
    _
  %s10 = ssub.s32 1, %s8
  %s11 = scalar_select 0, %s10, %s8
  $region1: #{team_gnn_forward.1} parent=0
    #allocation2 [shape = 'u8[8192]{0}', space=vmem, size = 0x2000, scoped, tag = 'output window, operand 0, single buffered']
    #allocation3 [shape = 's32[1]{0}', space=sflag, size = 0x4, scoped, tag = 'scoped memory for team_gnn_forward.1']
    %12 = vsyncpa [#allocation3], 0
    // Predicated region
    $region2: #{team_gnn_forward.1} parent=1 // pred_check
      _
    $region3: #{team_gnn_forward.1} parent=1 // pred_check_branch
      %14 = sbr.rel (0) target = $region5
    $region4: #{team_gnn_forward.1} parent=1 // pred_region
      _
    $region5: #{team_gnn_forward.1} parent=1 // pred_fallthru
      _
    // Predicated region
    $region6: #{team_gnn_forward.1} parent=1 // pred_check
      _
    $region7: #{team_gnn_forward.1} parent=1 // pred_check_branch
      %16 = sbr.rel (0) target = $region9
    $region8: #{team_gnn_forward.1} parent=1 // pred_region
      _
    $region9: #{team_gnn_forward.1} parent=1 // pred_fallthru
      _
    // Predicated region
    $region10: #{team_gnn_forward.1} parent=1 // pred_check
      _
    $region11: #{team_gnn_forward.1} parent=1 // pred_check_branch
      %18 = sbr.rel (0) target = $region13
    $region12: #{team_gnn_forward.1} parent=1 // pred_region
      _
    $region13: #{team_gnn_forward.1} parent=1 // pred_fallthru
      _
    // Predicated region
    $region14: #{team_gnn_forward.1} parent=1 // pred_check
      _
    $region15: #{team_gnn_forward.1} parent=1 // pred_check_branch
      %20 = sbr.rel (0) target = $region17
    $region16: #{team_gnn_forward.1} parent=1 // pred_region
      _
    $region17: #{team_gnn_forward.1} parent=1 // pred_fallthru
      _
    // Predicated region
    $region18: #{team_gnn_forward.1} parent=1 // pred_check
      _
    $region19: #{team_gnn_forward.1} parent=1 // pred_check_branch
      %22 = sbr.rel (0) target = $region21
    $region20: #{team_gnn_forward.1} parent=1 // pred_region
      _
    $region21: #{team_gnn_forward.1} parent=1 // pred_fallthru
      _
    // Predicated region
    $region22: #{team_gnn_forward.1} parent=1 // pred_check
      _
    $region23: #{team_gnn_forward.1} parent=1 // pred_check_branch
      %24 = sbr.rel (0) target = $region25
    $region24: #{team_gnn_forward.1} parent=1 // pred_region
      _
    $region25: #{team_gnn_forward.1} parent=1 // pred_fallthru
      _
    // Predicated region
    $region26: #{team_gnn_forward.1} parent=1 // pred_check
      _
    $region27: #{team_gnn_forward.1} parent=1 // pred_check_branch
      %26 = sbr.rel (0) target = $region29
    $region28: #{team_gnn_forward.1} parent=1 // pred_region
      _
    $region29: #{team_gnn_forward.1} parent=1 // pred_fallthru
      _
    %v28 = vld [vmem:[%s0] sm:$0xf]
    %v29 = vld [vmem:[%s0 + $0x4] sm:$0xf]
    %v30 = vld [vmem:[%s0 + $0x8] sm:$0xf]
    %v31 = vld [vmem:[%s0 + $0xc] sm:$0xf]
    %v32 = vld [vmem:[%s0 + $0x10] sm:$0xf]
    %v33 = vld [vmem:[%s0 + $0x14] sm:$0xf]
    %v34 = vld [vmem:[%s0 + $0x18] sm:$0xf]
    %v35 = vld [vmem:[%s0 + $0x1c] sm:$0xf]
    %v36 = vld [vmem:[%s0 + $0x20] sm:$0xf]
    %v37 = vld [vmem:[%s0 + $0x24] sm:$0xf]
    %v38 = vld [vmem:[%s0 + $0x28] sm:$0xf]
    %v39 = vld [vmem:[%s0 + $0x2c] sm:$0xf]
    %v40 = vld [vmem:[%s0 + $0x30] sm:$0xf]
    %v41 = vld [vmem:[%s0 + $0x34] sm:$0xf]
    %v42 = vld [vmem:[%s0 + $0x38] sm:$0xf]
    %v43 = vld [vmem:[%s0 + $0x3c] sm:$0xf]
    %v44 = vld [vmem:[%s1] sm:$0xff]
    %v45 = vld [vmem:[%s1 + $0x8] sm:$0xff]
    %v46 = vld [vmem:[%s1 + $0x10] sm:$0xff]
    %v47 = vld [vmem:[%s1 + $0x18] sm:$0xff]
    %v48 = vld [vmem:[%s1 + $0x20] sm:$0xff]
    %v49 = vld [vmem:[%s1 + $0x28] sm:$0xff]
    %v50 = vld [vmem:[%s1 + $0x30] sm:$0xff]
    %v51 = vld [vmem:[%s1 + $0x38] sm:$0xff]
    %v52 = vld [vmem:[%s1 + $0x40] sm:$0xff]
    %v53 = vld [vmem:[%s1 + $0x48] sm:$0xff]
    %v54 = vld [vmem:[%s1 + $0x50] sm:$0xff]
    %v55 = vld [vmem:[%s1 + $0x58] sm:$0xff]
    %v56 = vld [vmem:[%s1 + $0x60] sm:$0xff]
    %v57 = vld [vmem:[%s1 + $0x68] sm:$0xff]
    %v58 = vld [vmem:[%s1 + $0x70] sm:$0xff]
    %v59 = vld [vmem:[%s1 + $0x78] sm:$0xff]
    %v60 = vld [vmem:[%s5] sm:$0xff]
    %v61 = vld [vmem:[%s2] sm:$0xf]
    %v62 = vld [vmem:[%s2 + $0x4] sm:$0xf]
    %v63 = vld [vmem:[%s2 + $0x8] sm:$0xf]
    %v64 = vld [vmem:[%s2 + $0xc] sm:$0xf]
    %v65 = vld [vmem:[%s2 + $0x10] sm:$0xf]
    %v66 = vld [vmem:[%s2 + $0x14] sm:$0xf]
    %v67 = vld [vmem:[%s2 + $0x18] sm:$0xf]
    %v68 = vld [vmem:[%s2 + $0x1c] sm:$0xf]
    %v69 = vld [vmem:[%s2 + $0x20] sm:$0xf]
    %v70 = vld [vmem:[%s2 + $0x24] sm:$0xf]
    %v71 = vld [vmem:[%s2 + $0x28] sm:$0xf]
    %v72 = vld [vmem:[%s2 + $0x2c] sm:$0xf]
    %v73 = vld [vmem:[%s2 + $0x30] sm:$0xf]
    %v74 = vld [vmem:[%s2 + $0x34] sm:$0xf]
    %v75 = vld [vmem:[%s2 + $0x38] sm:$0xf]
    %v76 = vld [vmem:[%s2 + $0x3c] sm:$0xf]
    %v77 = vld [vmem:[%s3] sm:$0xf]
    %v78 = vld [vmem:[%s3 + $0x4] sm:$0xf]
    %v79 = vld [vmem:[%s3 + $0x8] sm:$0xf]
    %v80 = vld [vmem:[%s3 + $0xc] sm:$0xf]
    %v81 = vld [vmem:[%s3 + $0x10] sm:$0xf]
    %v82 = vld [vmem:[%s3 + $0x14] sm:$0xf]
    %v83 = vld [vmem:[%s3 + $0x18] sm:$0xf]
    %v84 = vld [vmem:[%s3 + $0x1c] sm:$0xf]
    %v85 = vld [vmem:[%s3 + $0x20] sm:$0xf]
    %v86 = vld [vmem:[%s3 + $0x24] sm:$0xf]
    %v87 = vld [vmem:[%s3 + $0x28] sm:$0xf]
    %v88 = vld [vmem:[%s3 + $0x2c] sm:$0xf]
    %v89 = vld [vmem:[%s3 + $0x30] sm:$0xf]
    %v90 = vld [vmem:[%s3 + $0x34] sm:$0xf]
    %v91 = vld [vmem:[%s3 + $0x38] sm:$0xf]
    %v92 = vld [vmem:[%s3 + $0x3c] sm:$0xf]
    %v109 = vunpack.c.l.b16 %v61
    %v110 = vunpack.c.l.b16 %v62
    %v111 = vunpack.c.l.b16 %v63
    %v112 = vunpack.c.l.b16 %v64
    %v113 = vunpack.c.l.b16 %v65
    %v114 = vunpack.c.l.b16 %v66
    %v115 = vunpack.c.l.b16 %v67
    %v116 = vunpack.c.l.b16 %v68
    %v117 = vunpack.c.l.b16 %v69
    %v118 = vunpack.c.l.b16 %v70
    %v119 = vunpack.c.l.b16 %v71
    %v120 = vunpack.c.l.b16 %v72
    %v121 = vunpack.c.l.b16 %v73
    %v122 = vunpack.c.l.b16 %v74
    %v123 = vunpack.c.l.b16 %v75
    %v124 = vunpack.c.l.b16 %v76
    %v125 = vpack.c.b16 %v110, %v109
    %v126 = vpack.c.b16 %v112, %v111
    %v127 = vpack.c.b16 %v114, %v113
    %v128 = vpack.c.b16 %v116, %v115
    %v129 = vpack.c.b16 %v118, %v117
    %v130 = vpack.c.b16 %v120, %v119
    %v131 = vpack.c.b16 %v122, %v121
    %v132 = vpack.c.b16 %v124, %v123
    %v157 = vunpack.c.l.b16 %v77
    %v158 = vunpack.c.l.b16 %v78
    %v159 = vunpack.c.l.b16 %v79
    %v160 = vunpack.c.l.b16 %v80
    %v161 = vunpack.c.l.b16 %v81
    %v162 = vunpack.c.l.b16 %v82
    %v163 = vunpack.c.l.b16 %v83
    %v164 = vunpack.c.l.b16 %v84
    %v165 = vunpack.c.l.b16 %v85
    %v166 = vunpack.c.l.b16 %v86
    %v167 = vunpack.c.l.b16 %v87
    %v168 = vunpack.c.l.b16 %v88
    %v169 = vunpack.c.l.b16 %v89
    %v170 = vunpack.c.l.b16 %v90
    %v171 = vunpack.c.l.b16 %v91
    %v172 = vunpack.c.l.b16 %v92
    %v173 = vpack.c.b16 %v158, %v157
    %v174 = vpack.c.b16 %v160, %v159
    %v175 = vpack.c.b16 %v162, %v161
    %v176 = vpack.c.b16 %v164, %v163
    %v177 = vpack.c.b16 %v166, %v165
    %v178 = vpack.c.b16 %v168, %v167
    %v179 = vpack.c.b16 %v170, %v169
    %v180 = vpack.c.b16 %v172, %v171
    %189 = vmatprep.subr.bf16.mxu0 0
    %190 = vmatpush1.bf16.msra.mxu0 %v173
    %191 = vmatprep.subr.bf16.mxu0 0
    %192 = vmatpush1.bf16.msra.mxu0 %v174
    %193 = vmatprep.subr.bf16.mxu0 0
    %194 = vmatpush1.bf16.msra.mxu0 %v175
    %195 = vmatprep.subr.bf16.mxu0 0
    %196 = vmatpush1.bf16.msra.mxu0 %v176
    %197 = vmatprep.subr.bf16.mxu0 0
    %198 = vmatpush1.bf16.msra.mxu0 %v177
    %199 = vmatprep.subr.bf16.mxu0 0
    %200 = vmatpush1.bf16.msra.mxu0 %v178
    %201 = vmatprep.subr.bf16.mxu0 0
    %202 = vmatpush1.bf16.msra.mxu0 %v179
    %203 = vmatprep.subr.bf16.mxu0 0
    %204 = vmatpush1.bf16.msra.mxu0 %v180
    %205 = vmatprep.subr.bf16.mxu0 0
    %206 = vmatpush1.bf16.msra.mxu0 0
    %207 = vmatprep.subr.bf16.mxu0 0
    %208 = vmatpush1.bf16.msra.mxu0 0
    %209 = vmatprep.subr.bf16.mxu0 0
    %210 = vmatpush1.bf16.msra.mxu0 0
    %211 = vmatprep.subr.bf16.mxu0 0
    %212 = vmatpush1.bf16.msra.mxu0 0
    %213 = vmatprep.subr.bf16.mxu0 0
    %214 = vmatpush1.bf16.msra.mxu0 0
    %215 = vmatprep.subr.bf16.mxu0 0
    %216 = vmatpush1.bf16.msra.mxu0 0
    %217 = vmatprep.subr.bf16.mxu0 0
    %218 = vmatpush1.bf16.msra.mxu0 0
    %219 = vmatprep.subr.bf16.mxu0 0
    %220 = vmatpush1.bf16.msra.mxu0 0
    %221 = vmatprep.mubr.bf16.mxu0 0
    %222 = vmatmul.mubr.bf16.gmra.mrb[0].mxu0 %v125
    %v223 = vpop.f32.mrb[0].mxu0
    %v224 = vadd.f32 0.0, %v223
    %v225 = vpop.f32.mrb[0].mxu0
    %v226 = vpop.f32.mrb[0].mxu0
    %v227 = vadd.f32 0.0, %v226
    %v228 = vpop.f32.mrb[0].mxu0
    %229 = vmatprep.mubr.bf16.mxu0 0
    %230 = vmatmul.mubr.bf16.gmra.mrb[0].mxu0 %v126
    %v231 = vpop.f32.mrb[0].mxu0
    %v232 = vadd.f32 0.0, %v231
    %v233 = vpop.f32.mrb[0].mxu0
    %v234 = vpop.f32.mrb[0].mxu0
    %v235 = vadd.f32 0.0, %v234
    %v236 = vpop.f32.mrb[0].mxu0
    %237 = vmatprep.mubr.bf16.mxu0 0
    %238 = vmatmul.mubr.bf16.gmra.mrb[0].mxu0 %v127
    %v239 = vpop.f32.mrb[0].mxu0
    %v240 = vadd.f32 0.0, %v239
    %v241 = vpop.f32.mrb[0].mxu0
    %v242 = vpop.f32.mrb[0].mxu0
    %v243 = vadd.f32 0.0, %v242
    %v244 = vpop.f32.mrb[0].mxu0
    %245 = vmatprep.mubr.bf16.mxu0 0
    %246 = vmatmul.mubr.bf16.gmra.mrb[0].mxu0 %v128
    %v247 = vpop.f32.mrb[0].mxu0
    %v248 = vadd.f32 0.0, %v247
    %v249 = vpop.f32.mrb[0].mxu0
    %v250 = vpop.f32.mrb[0].mxu0
    %v251 = vadd.f32 0.0, %v250
    %v252 = vpop.f32.mrb[0].mxu0
    %253 = vmatprep.mubr.bf16.mxu0 0
    %254 = vmatmul.mubr.bf16.gmra.mrb[0].mxu0 %v129
    %v255 = vpop.f32.mrb[0].mxu0
    %v256 = vadd.f32 0.0, %v255
    %v257 = vpop.f32.mrb[0].mxu0
    %v258 = vpop.f32.mrb[0].mxu0
    %v259 = vadd.f32 0.0, %v258
    %v260 = vpop.f32.mrb[0].mxu0
    %261 = vmatprep.mubr.bf16.mxu0 0
    %262 = vmatmul.mubr.bf16.gmra.mrb[0].mxu0 %v130
    %v263 = vpop.f32.mrb[0].mxu0
    %v264 = vadd.f32 0.0, %v263
    %v265 = vpop.f32.mrb[0].mxu0
    %v266 = vpop.f32.mrb[0].mxu0
    %v267 = vadd.f32 0.0, %v266
    %v268 = vpop.f32.mrb[0].mxu0
    %269 = vmatprep.mubr.bf16.mxu0 0
    %270 = vmatmul.mubr.bf16.gmra.mrb[0].mxu0 %v131
    %v271 = vpop.f32.mrb[0].mxu0
    %v272 = vadd.f32 0.0, %v271
    %v273 = vpop.f32.mrb[0].mxu0
    %v274 = vpop.f32.mrb[0].mxu0
    %v275 = vadd.f32 0.0, %v274
    %v276 = vpop.f32.mrb[0].mxu0
    %277 = vmatprep.mubr.bf16.mxu0 0
    %278 = vmatmul.mubr.bf16.gmra.mrb[0].mxu0 %v132
    %v279 = vpop.f32.mrb[0].mxu0
    %v280 = vadd.f32 0.0, %v279
    %v281 = vpop.f32.mrb[0].mxu0
    %v282 = vpop.f32.mrb[0].mxu0
    %v283 = vadd.f32 0.0, %v282
    %v284 = vpop.f32.mrb[0].mxu0
    %285 = vdwg.mxu0
    %287 = vset.pattern.permute.xlu0 0
    %288 = vperm.xlu0 %287, %v44
    %v289 = vpop.permute.xlu0 %288
    %292 = vset.pattern.permute.xlu0 0
    %293 = vperm.xlu0 %292, %v45
    %v294 = vpop.permute.xlu0 %293
    %297 = vset.pattern.permute.xlu0 0
    %298 = vperm.xlu0 %297, %v46
    %v299 = vpop.permute.xlu0 %298
    %302 = vset.pattern.permute.xlu0 0
    %303 = vperm.xlu0 %302, %v47
    %v304 = vpop.permute.xlu0 %303
    %307 = vset.pattern.permute.xlu0 0
    %308 = vperm.xlu0 %307, %v48
    %v309 = vpop.permute.xlu0 %308
    %312 = vset.pattern.permute.xlu0 0
    %313 = vperm.xlu0 %312, %v49
    %v314 = vpop.permute.xlu0 %313
    %317 = vset.pattern.permute.xlu0 0
    %318 = vperm.xlu0 %317, %v50
    %v319 = vpop.permute.xlu0 %318
    %322 = vset.pattern.permute.xlu0 0
    %323 = vperm.xlu0 %322, %v51
    %v324 = vpop.permute.xlu0 %323
    %327 = vset.pattern.permute.xlu0 0
    %328 = vperm.xlu0 %327, %v52
    %v329 = vpop.permute.xlu0 %328
    %332 = vset.pattern.permute.xlu0 0
    %333 = vperm.xlu0 %332, %v53
    %v334 = vpop.permute.xlu0 %333
    %337 = vset.pattern.permute.xlu0 0
    %338 = vperm.xlu0 %337, %v54
    %v339 = vpop.permute.xlu0 %338
    %342 = vset.pattern.permute.xlu0 0
    %343 = vperm.xlu0 %342, %v55
    %v344 = vpop.permute.xlu0 %343
    %347 = vset.pattern.permute.xlu0 0
    %348 = vperm.xlu0 %347, %v56
    %v349 = vpop.permute.xlu0 %348
    %352 = vset.pattern.permute.xlu0 0
    %353 = vperm.xlu0 %352, %v57
    %v354 = vpop.permute.xlu0 %353
    %357 = vset.pattern.permute.xlu0 0
    %358 = vperm.xlu0 %357, %v58
    %v359 = vpop.permute.xlu0 %358
    %362 = vset.pattern.permute.xlu0 0
    %363 = vperm.xlu0 %362, %v59
    %v364 = vpop.permute.xlu0 %363
    %v366 = vmul.f32 %v289, %v224
    %v367 = vmul.f32 %v294, %v227
    %v368 = vmul.f32 %v299, %v232
    %v369 = vmul.f32 %v304, %v235
    %v370 = vmul.f32 %v309, %v240
    %v371 = vmul.f32 %v314, %v243
    %v372 = vmul.f32 %v319, %v248
    %v373 = vmul.f32 %v324, %v251
    %v374 = vmul.f32 %v329, %v256
    %v375 = vmul.f32 %v334, %v259
    %v376 = vmul.f32 %v339, %v264
    %v377 = vmul.f32 %v344, %v267
    %v378 = vmul.f32 %v349, %v272
    %v379 = vmul.f32 %v354, %v275
    %v380 = vmul.f32 %v359, %v280
    %v381 = vmul.f32 %v364, %v283
    %v382 = vpack.c.bf16 %v367, %v366
    %v383 = vpack.c.bf16 %v369, %v368
    %v384 = vpack.c.bf16 %v371, %v370
    %v385 = vpack.c.bf16 %v373, %v372
    %v386 = vpack.c.bf16 %v375, %v374
    %v387 = vpack.c.bf16 %v377, %v376
    %v388 = vpack.c.bf16 %v379, %v378
    %v389 = vpack.c.bf16 %v381, %v380
    %v406 = vunpack.c.l.b16 %v28
    %v407 = vunpack.c.l.b16 %v29
    %v408 = vunpack.c.l.b16 %v30
    %v409 = vunpack.c.l.b16 %v31
    %v410 = vunpack.c.l.b16 %v32
    %v411 = vunpack.c.l.b16 %v33
    %v412 = vunpack.c.l.b16 %v34
    %v413 = vunpack.c.l.b16 %v35
    %v414 = vunpack.c.l.b16 %v36
    %v415 = vunpack.c.l.b16 %v37
    %v416 = vunpack.c.l.b16 %v38
    %v417 = vunpack.c.l.b16 %v39
    %v418 = vunpack.c.l.b16 %v40
    %v419 = vunpack.c.l.b16 %v41
    %v420 = vunpack.c.l.b16 %v42
    %v421 = vunpack.c.l.b16 %v43
    %v422 = vpack.c.b16 %v407, %v406
    %v423 = vpack.c.b16 %v409, %v408
    %v424 = vpack.c.b16 %v411, %v410
    %v425 = vpack.c.b16 %v413, %v412
    %v426 = vpack.c.b16 %v415, %v414
    %v427 = vpack.c.b16 %v417, %v416
    %v428 = vpack.c.b16 %v419, %v418
    %v429 = vpack.c.b16 %v421, %v420
    %438 = vmatprep.subr.bf16.mxu0 0
    %439 = vmatpush1.bf16.msra.mxu0 %v382
    %440 = vmatprep.subr.bf16.mxu0 0
    %441 = vmatpush1.bf16.msra.mxu0 %v383
    %442 = vmatprep.subr.bf16.mxu0 0
    %443 = vmatpush1.bf16.msra.mxu0 %v384
    %444 = vmatprep.subr.bf16.mxu0 0
    %445 = vmatpush1.bf16.msra.mxu0 %v385
    %446 = vmatprep.subr.bf16.mxu0 0
    %447 = vmatpush1.bf16.msra.mxu0 %v386
    %448 = vmatprep.subr.bf16.mxu0 0
    %449 = vmatpush1.bf16.msra.mxu0 %v387
    %450 = vmatprep.subr.bf16.mxu0 0
    %451 = vmatpush1.bf16.msra.mxu0 %v388
    %452 = vmatprep.subr.bf16.mxu0 0
    %453 = vmatpush1.bf16.msra.mxu0 %v389
    %454 = vmatprep.subr.bf16.mxu0 0
    %455 = vmatpush1.bf16.msra.mxu0 0
    %456 = vmatprep.subr.bf16.mxu0 0
    %457 = vmatpush1.bf16.msra.mxu0 0
    %458 = vmatprep.subr.bf16.mxu0 0
    %459 = vmatpush1.bf16.msra.mxu0 0
    %460 = vmatprep.subr.bf16.mxu0 0
    %461 = vmatpush1.bf16.msra.mxu0 0
    %462 = vmatprep.subr.bf16.mxu0 0
    %463 = vmatpush1.bf16.msra.mxu0 0
    %464 = vmatprep.subr.bf16.mxu0 0
    %465 = vmatpush1.bf16.msra.mxu0 0
    %466 = vmatprep.subr.bf16.mxu0 0
    %467 = vmatpush1.bf16.msra.mxu0 0
    %468 = vmatprep.subr.bf16.mxu0 0
    %469 = vmatpush1.bf16.msra.mxu0 0
    %470 = vmatprep.mubr.bf16.mxu0 0
    %471 = vmatmul.mubr.bf16.gmra.mrb[0].mxu0 %v422
    %v472 = vpop.f32.mrb[0].mxu0
    %v473 = vadd.f32 0.0, %v472
    %v474 = vpop.f32.mrb[0].mxu0
    %v475 = vpop.f32.mrb[0].mxu0
    %v476 = vadd.f32 0.0, %v475
    %v477 = vpop.f32.mrb[0].mxu0
    %478 = vmatprep.mubr.bf16.mxu0 0
    %479 = vmatmul.mubr.bf16.gmra.mrb[0].mxu0 %v423
    %v480 = vpop.f32.mrb[0].mxu0
    %v481 = vadd.f32 0.0, %v480
    %v482 = vpop.f32.mrb[0].mxu0
    %v483 = vpop.f32.mrb[0].mxu0
    %v484 = vadd.f32 0.0, %v483
    %v485 = vpop.f32.mrb[0].mxu0
    %486 = vmatprep.mubr.bf16.mxu0 0
    %487 = vmatmul.mubr.bf16.gmra.mrb[0].mxu0 %v424
    %v488 = vpop.f32.mrb[0].mxu0
    %v489 = vadd.f32 0.0, %v488
    %v490 = vpop.f32.mrb[0].mxu0
    %v491 = vpop.f32.mrb[0].mxu0
    %v492 = vadd.f32 0.0, %v491
    %v493 = vpop.f32.mrb[0].mxu0
    %494 = vmatprep.mubr.bf16.mxu0 0
    %495 = vmatmul.mubr.bf16.gmra.mrb[0].mxu0 %v425
    %v496 = vpop.f32.mrb[0].mxu0
    %v497 = vadd.f32 0.0, %v496
    %v498 = vpop.f32.mrb[0].mxu0
    %v499 = vpop.f32.mrb[0].mxu0
    %v500 = vadd.f32 0.0, %v499
    %v501 = vpop.f32.mrb[0].mxu0
    %502 = vmatprep.mubr.bf16.mxu0 0
    %503 = vmatmul.mubr.bf16.gmra.mrb[0].mxu0 %v426
    %v504 = vpop.f32.mrb[0].mxu0
    %v505 = vadd.f32 0.0, %v504
    %v506 = vpop.f32.mrb[0].mxu0
    %v507 = vpop.f32.mrb[0].mxu0
    %v508 = vadd.f32 0.0, %v507
    %v509 = vpop.f32.mrb[0].mxu0
    %510 = vmatprep.mubr.bf16.mxu0 0
    %511 = vmatmul.mubr.bf16.gmra.mrb[0].mxu0 %v427
    %v512 = vpop.f32.mrb[0].mxu0
    %v513 = vadd.f32 0.0, %v512
    %v514 = vpop.f32.mrb[0].mxu0
    %v515 = vpop.f32.mrb[0].mxu0
    %v516 = vadd.f32 0.0, %v515
    %v517 = vpop.f32.mrb[0].mxu0
    %518 = vmatprep.mubr.bf16.mxu0 0
    %519 = vmatmul.mubr.bf16.gmra.mrb[0].mxu0 %v428
    %v520 = vpop.f32.mrb[0].mxu0
    %v521 = vadd.f32 0.0, %v520
    %v522 = vpop.f32.mrb[0].mxu0
    %v523 = vpop.f32.mrb[0].mxu0
    %v524 = vadd.f32 0.0, %v523
    %v525 = vpop.f32.mrb[0].mxu0
    %526 = vmatprep.mubr.bf16.mxu0 0
    %527 = vmatmul.mubr.bf16.gmra.mrb[0].mxu0 %v429
    %v528 = vpop.f32.mrb[0].mxu0
    %v529 = vadd.f32 0.0, %v528
    %v530 = vpop.f32.mrb[0].mxu0
    %v531 = vpop.f32.mrb[0].mxu0
    %v532 = vadd.f32 0.0, %v531
    %v533 = vpop.f32.mrb[0].mxu0
    %534 = vdwg.mxu0
    %v535 = vmul.f32 %v289, %v473
    %v536 = vmul.f32 %v294, %v476
    %v537 = vmul.f32 %v299, %v481
    %v538 = vmul.f32 %v304, %v484
    %v539 = vmul.f32 %v309, %v489
    %v540 = vmul.f32 %v314, %v492
    %v541 = vmul.f32 %v319, %v497
    %v542 = vmul.f32 %v324, %v500
    %v543 = vmul.f32 %v329, %v505
    %v544 = vmul.f32 %v334, %v508
    %v545 = vmul.f32 %v339, %v513
    %v546 = vmul.f32 %v344, %v516
    %v547 = vmul.f32 %v349, %v521
    %v548 = vmul.f32 %v354, %v524
    %v549 = vmul.f32 %v359, %v529
    %v550 = vmul.f32 %v364, %v532
    %v551 = vlaneseq
    %v552 = vshrl.u32 %v551, 7
    %v553 = vsub.s32 0, %v552
    %v554 = vrot.slane %v60, %v553
    %v555 = vadd.f32 %v535, %v554
    %v556 = vadd.f32 %v536, %v554
    %v557 = vadd.f32 %v537, %v554
    %v558 = vadd.f32 %v538, %v554
    %v559 = vadd.f32 %v539, %v554
    %v560 = vadd.f32 %v540, %v554
    %v561 = vadd.f32 %v541, %v554
    %v562 = vadd.f32 %v542, %v554
    %v563 = vadd.f32 %v543, %v554
    %v564 = vadd.f32 %v544, %v554
    %v565 = vadd.f32 %v545, %v554
    %v566 = vadd.f32 %v546, %v554
    %v567 = vadd.f32 %v547, %v554
    %v568 = vadd.f32 %v548, %v554
    %v569 = vadd.f32 %v549, %v554
    %v570 = vadd.f32 %v550, %v554
    %571 = vadd.xlane.f32.xlu0 %v555
    %v572 = vpop.xlane.xlu0 %571
    %573 = vadd.xlane.f32.xlu0 %v556
    %v574 = vpop.xlane.xlu0 %573
    %575 = vadd.xlane.f32.xlu0 %v557
    %v576 = vpop.xlane.xlu0 %575
    %577 = vadd.xlane.f32.xlu0 %v558
    %v578 = vpop.xlane.xlu0 %577
    %579 = vadd.xlane.f32.xlu0 %v559
    %v580 = vpop.xlane.xlu0 %579
    %581 = vadd.xlane.f32.xlu0 %v560
    %v582 = vpop.xlane.xlu0 %581
    %583 = vadd.xlane.f32.xlu0 %v561
    %v584 = vpop.xlane.xlu0 %583
    %585 = vadd.xlane.f32.xlu0 %v562
    %v586 = vpop.xlane.xlu0 %585
    %587 = vadd.xlane.f32.xlu0 %v563
    %v588 = vpop.xlane.xlu0 %587
    %589 = vadd.xlane.f32.xlu0 %v564
    %v590 = vpop.xlane.xlu0 %589
    %591 = vadd.xlane.f32.xlu0 %v565
    %v592 = vpop.xlane.xlu0 %591
    %593 = vadd.xlane.f32.xlu0 %v566
    %v594 = vpop.xlane.xlu0 %593
    %595 = vadd.xlane.f32.xlu0 %v567
    %v596 = vpop.xlane.xlu0 %595
    %597 = vadd.xlane.f32.xlu0 %v568
    %v598 = vpop.xlane.xlu0 %597
    %599 = vadd.xlane.f32.xlu0 %v569
    %v600 = vpop.xlane.xlu0 %599
    %601 = vadd.xlane.f32.xlu0 %v570
    %v602 = vpop.xlane.xlu0 %601
    %v603 = vmul.f32 %v572, 0.03125
    %v604 = vmul.f32 %v574, 0.03125
    %v605 = vmul.f32 %v576, 0.03125
    %v606 = vmul.f32 %v578, 0.03125
    %v607 = vmul.f32 %v580, 0.03125
    %v608 = vmul.f32 %v582, 0.03125
    %v609 = vmul.f32 %v584, 0.03125
    %v610 = vmul.f32 %v586, 0.03125
    %v611 = vmul.f32 %v588, 0.03125
    %v612 = vmul.f32 %v590, 0.03125
    %v613 = vmul.f32 %v592, 0.03125
    %v614 = vmul.f32 %v594, 0.03125
    %v615 = vmul.f32 %v596, 0.03125
    %v616 = vmul.f32 %v598, 0.03125
    %v617 = vmul.f32 %v600, 0.03125
    %v618 = vmul.f32 %v602, 0.03125
    %v619 = vmul.f32 %v555, %v555
    %v620 = vmul.f32 %v556, %v556
    %v621 = vmul.f32 %v557, %v557
    %v622 = vmul.f32 %v558, %v558
    %v623 = vmul.f32 %v559, %v559
    %v624 = vmul.f32 %v560, %v560
    %v625 = vmul.f32 %v561, %v561
    %v626 = vmul.f32 %v562, %v562
    %v627 = vmul.f32 %v563, %v563
    %v628 = vmul.f32 %v564, %v564
    %v629 = vmul.f32 %v565, %v565
    %v630 = vmul.f32 %v566, %v566
    %v631 = vmul.f32 %v567, %v567
    %v632 = vmul.f32 %v568, %v568
    %v633 = vmul.f32 %v569, %v569
    %v634 = vmul.f32 %v570, %v570
    %635 = vadd.xlane.f32.xlu0 %v619
    %v636 = vpop.xlane.xlu0 %635
    %637 = vadd.xlane.f32.xlu0 %v620
    %v638 = vpop.xlane.xlu0 %637
    %639 = vadd.xlane.f32.xlu0 %v621
    %v640 = vpop.xlane.xlu0 %639
    %641 = vadd.xlane.f32.xlu0 %v622
    %v642 = vpop.xlane.xlu0 %641
    %643 = vadd.xlane.f32.xlu0 %v623
    %v644 = vpop.xlane.xlu0 %643
    %645 = vadd.xlane.f32.xlu0 %v624
    %v646 = vpop.xlane.xlu0 %645
    %647 = vadd.xlane.f32.xlu0 %v625
    %v648 = vpop.xlane.xlu0 %647
    %649 = vadd.xlane.f32.xlu0 %v626
    %v650 = vpop.xlane.xlu0 %649
    %651 = vadd.xlane.f32.xlu0 %v627
    %v652 = vpop.xlane.xlu0 %651
    %653 = vadd.xlane.f32.xlu0 %v628
    %v654 = vpop.xlane.xlu0 %653
    %655 = vadd.xlane.f32.xlu0 %v629
    %v656 = vpop.xlane.xlu0 %655
    %657 = vadd.xlane.f32.xlu0 %v630
    %v658 = vpop.xlane.xlu0 %657
    %659 = vadd.xlane.f32.xlu0 %v631
    %v660 = vpop.xlane.xlu0 %659
    %661 = vadd.xlane.f32.xlu0 %v632
    %v662 = vpop.xlane.xlu0 %661
    %663 = vadd.xlane.f32.xlu0 %v633
    %v664 = vpop.xlane.xlu0 %663
    %665 = vadd.xlane.f32.xlu0 %v634
    %v666 = vpop.xlane.xlu0 %665
    %v667 = vmul.f32 %v636, 0.03125
    %v668 = vmul.f32 %v638, 0.03125
    %v669 = vmul.f32 %v640, 0.03125
    %v670 = vmul.f32 %v642, 0.03125
    %v671 = vmul.f32 %v644, 0.03125
    %v672 = vmul.f32 %v646, 0.03125
    %v673 = vmul.f32 %v648, 0.03125
    %v674 = vmul.f32 %v650, 0.03125
    %v675 = vmul.f32 %v652, 0.03125
    %v676 = vmul.f32 %v654, 0.03125
    %v677 = vmul.f32 %v656, 0.03125
    %v678 = vmul.f32 %v658, 0.03125
    %v679 = vmul.f32 %v660, 0.03125
    %v680 = vmul.f32 %v662, 0.03125
    %v681 = vmul.f32 %v664, 0.03125
    %v682 = vmul.f32 %v666, 0.03125
    %v683 = vmul.f32 %v603, %v603
    %v684 = vmul.f32 %v604, %v604
    %v685 = vmul.f32 %v605, %v605
    %v686 = vmul.f32 %v606, %v606
    %v687 = vmul.f32 %v607, %v607
    %v688 = vmul.f32 %v608, %v608
    %v689 = vmul.f32 %v609, %v609
    %v690 = vmul.f32 %v610, %v610
    %v691 = vmul.f32 %v611, %v611
    %v692 = vmul.f32 %v612, %v612
    %v693 = vmul.f32 %v613, %v613
    %v694 = vmul.f32 %v614, %v614
    %v695 = vmul.f32 %v615, %v615
    %v696 = vmul.f32 %v616, %v616
    %v697 = vmul.f32 %v617, %v617
    %v698 = vmul.f32 %v618, %v618
    %v699 = vsub.f32 %v667, %v683
    %v700 = vsub.f32 %v668, %v684
    %v701 = vsub.f32 %v669, %v685
    %v702 = vsub.f32 %v670, %v686
    %v703 = vsub.f32 %v671, %v687
    %v704 = vsub.f32 %v672, %v688
    %v705 = vsub.f32 %v673, %v689
    %v706 = vsub.f32 %v674, %v690
    %v707 = vsub.f32 %v675, %v691
    %v708 = vsub.f32 %v676, %v692
    %v709 = vsub.f32 %v677, %v693
    %v710 = vsub.f32 %v678, %v694
    %v711 = vsub.f32 %v679, %v695
    %v712 = vsub.f32 %v680, %v696
    %v713 = vsub.f32 %v681, %v697
    %v714 = vsub.f32 %v682, %v698
    %v715 = vsub.f32 %v555, %v603
    %v716 = vsub.f32 %v556, %v604
    %v717 = vsub.f32 %v557, %v605
    %v718 = vsub.f32 %v558, %v606
    %v719 = vsub.f32 %v559, %v607
    %v720 = vsub.f32 %v560, %v608
    %v721 = vsub.f32 %v561, %v609
    %v722 = vsub.f32 %v562, %v610
    %v723 = vsub.f32 %v563, %v611
    %v724 = vsub.f32 %v564, %v612
    %v725 = vsub.f32 %v565, %v613
    %v726 = vsub.f32 %v566, %v614
    %v727 = vsub.f32 %v567, %v615
    %v728 = vsub.f32 %v568, %v616
    %v729 = vsub.f32 %v569, %v617
    %v730 = vsub.f32 %v570, %v618
    %v731 = vadd.f32 %v699, 1e-05
    %v732 = vadd.f32 %v700, 1e-05
    %v733 = vadd.f32 %v701, 1e-05
    %v734 = vadd.f32 %v702, 1e-05
    %v735 = vadd.f32 %v703, 1e-05
    %v736 = vadd.f32 %v704, 1e-05
    %v737 = vadd.f32 %v705, 1e-05
    %v738 = vadd.f32 %v706, 1e-05
    %v739 = vadd.f32 %v707, 1e-05
    %v740 = vadd.f32 %v708, 1e-05
    %v741 = vadd.f32 %v709, 1e-05
    %v742 = vadd.f32 %v710, 1e-05
    %v743 = vadd.f32 %v711, 1e-05
    %v744 = vadd.f32 %v712, 1e-05
    %v745 = vadd.f32 %v713, 1e-05
    %v746 = vadd.f32 %v714, 1e-05
    %v747 = vrsqrt.pop %v731
    %v748 = vrsqrt.pop %v732
    %v749 = vrsqrt.pop %v733
    %v750 = vrsqrt.pop %v734
    %v751 = vrsqrt.pop %v735
    %v752 = vrsqrt.pop %v736
    %v753 = vrsqrt.pop %v737
    %v754 = vrsqrt.pop %v738
    %v755 = vrsqrt.pop %v739
    %v756 = vrsqrt.pop %v740
    %v757 = vrsqrt.pop %v741
    %v758 = vrsqrt.pop %v742
    %v759 = vrsqrt.pop %v743
    %v760 = vrsqrt.pop %v744
    %v761 = vrsqrt.pop %v745
    %v762 = vrsqrt.pop %v746
    %v763 = vmul.f32 %v715, %v747
    %v764 = vmul.f32 %v716, %v748
    %v765 = vmul.f32 %v717, %v749
    %v766 = vmul.f32 %v718, %v750
    %v767 = vmul.f32 %v719, %v751
    %v768 = vmul.f32 %v720, %v752
    %v769 = vmul.f32 %v721, %v753
    %v770 = vmul.f32 %v722, %v754
    %v771 = vmul.f32 %v723, %v755
    %v772 = vmul.f32 %v724, %v756
    %v773 = vmul.f32 %v725, %v757
    %v774 = vmul.f32 %v726, %v758
    %v775 = vmul.f32 %v727, %v759
    %v776 = vmul.f32 %v728, %v760
    %v777 = vmul.f32 %v729, %v761
    %v778 = vmul.f32 %v730, %v762
    %v779 = vlaneseq
    %v780 = vshrl.u32 %v779, 7
    %v781 = vsub.s32 1, %v780
    %v782 = vrot.slane %v60, %v781
    %v783 = vmul.f32 %v763, %v782
    %v784 = vmul.f32 %v764, %v782
    %v785 = vmul.f32 %v765, %v782
    %v786 = vmul.f32 %v766, %v782
    %v787 = vmul.f32 %v767, %v782
    %v788 = vmul.f32 %v768, %v782
    %v789 = vmul.f32 %v769, %v782
    %v790 = vmul.f32 %v770, %v782
    %v791 = vmul.f32 %v771, %v782
    %v792 = vmul.f32 %v772, %v782
    %v793 = vmul.f32 %v773, %v782
    %v794 = vmul.f32 %v774, %v782
    %v795 = vmul.f32 %v775, %v782
    %v796 = vmul.f32 %v776, %v782
    %v797 = vmul.f32 %v777, %v782
    %v798 = vmul.f32 %v778, %v782
    %v799 = vlaneseq
    %v800 = vshrl.u32 %v799, 7
    %v801 = vsub.s32 2, %v800
    %v802 = vrot.slane %v60, %v801
    %v803 = vadd.f32 %v783, %v802
    %v804 = vadd.f32 %v784, %v802
    %v805 = vadd.f32 %v785, %v802
    %v806 = vadd.f32 %v786, %v802
    %v807 = vadd.f32 %v787, %v802
    %v808 = vadd.f32 %v788, %v802
    %v809 = vadd.f32 %v789, %v802
    %v810 = vadd.f32 %v790, %v802
    %v811 = vadd.f32 %v791, %v802
    %v812 = vadd.f32 %v792, %v802
    %v813 = vadd.f32 %v793, %v802
    %v814 = vadd.f32 %v794, %v802
    %v815 = vadd.f32 %v795, %v802
    %v816 = vadd.f32 %v796, %v802
    %v817 = vadd.f32 %v797, %v802
    %v818 = vadd.f32 %v798, %v802
    %vm819 = vcmp.gt.f32.partialorder %v803, 0.0
    %vm820 = vcmp.gt.f32.partialorder %v804, 0.0
    %vm821 = vcmp.gt.f32.partialorder %v805, 0.0
    %vm822 = vcmp.gt.f32.partialorder %v806, 0.0
    %vm823 = vcmp.gt.f32.partialorder %v807, 0.0
    %vm824 = vcmp.gt.f32.partialorder %v808, 0.0
    %vm825 = vcmp.gt.f32.partialorder %v809, 0.0
    %vm826 = vcmp.gt.f32.partialorder %v810, 0.0
    %vm827 = vcmp.gt.f32.partialorder %v811, 0.0
    %vm828 = vcmp.gt.f32.partialorder %v812, 0.0
    %vm829 = vcmp.gt.f32.partialorder %v813, 0.0
    %vm830 = vcmp.gt.f32.partialorder %v814, 0.0
    %vm831 = vcmp.gt.f32.partialorder %v815, 0.0
    %vm832 = vcmp.gt.f32.partialorder %v816, 0.0
    %vm833 = vcmp.gt.f32.partialorder %v817, 0.0
    %vm834 = vcmp.gt.f32.partialorder %v818, 0.0
    %v835 = vmul.f32 %v803, 0.01
    %v836 = vmul.f32 %v804, 0.01
    %v837 = vmul.f32 %v805, 0.01
    %v838 = vmul.f32 %v806, 0.01
    %v839 = vmul.f32 %v807, 0.01
    %v840 = vmul.f32 %v808, 0.01
    %v841 = vmul.f32 %v809, 0.01
    %v842 = vmul.f32 %v810, 0.01
    %v843 = vmul.f32 %v811, 0.01
    %v844 = vmul.f32 %v812, 0.01
    %v845 = vmul.f32 %v813, 0.01
    %v846 = vmul.f32 %v814, 0.01
    %v847 = vmul.f32 %v815, 0.01
    %v848 = vmul.f32 %v816, 0.01
    %v849 = vmul.f32 %v817, 0.01
    %v850 = vmul.f32 %v818, 0.01
    %v851 = vsel %vm819, %v803, %v835
    %v852 = vsel %vm820, %v804, %v836
    %v853 = vsel %vm821, %v805, %v837
    %v854 = vsel %vm822, %v806, %v838
    %v855 = vsel %vm823, %v807, %v839
    %v856 = vsel %vm824, %v808, %v840
    %v857 = vsel %vm825, %v809, %v841
    %v858 = vsel %vm826, %v810, %v842
    %v859 = vsel %vm827, %v811, %v843
    %v860 = vsel %vm828, %v812, %v844
    %v861 = vsel %vm829, %v813, %v845
    %v862 = vsel %vm830, %v814, %v846
    %v863 = vsel %vm831, %v815, %v847
    %v864 = vsel %vm832, %v816, %v848
    %v865 = vsel %vm833, %v817, %v849
    %v866 = vsel %vm834, %v818, %v850
    %v867 = vpack.c.bf16 %v852, %v851
    %v868 = vpack.c.bf16 %v854, %v853
    %v869 = vpack.c.bf16 %v856, %v855
    %v870 = vpack.c.bf16 %v858, %v857
    %v871 = vpack.c.bf16 %v860, %v859
    %v872 = vpack.c.bf16 %v862, %v861
    %v873 = vpack.c.bf16 %v864, %v863
    %v874 = vpack.c.bf16 %v866, %v865
    %v875 = vld [vmem:[%s4] sm:$0xf]
    %v876 = vld [vmem:[%s4 + $0x4] sm:$0xf]
    %v877 = vld [vmem:[%s4 + $0x8] sm:$0xf]
    %v878 = vld [vmem:[%s4 + $0xc] sm:$0xf]
    %v879 = vld [vmem:[%s4 + $0x10] sm:$0xf]
    %v880 = vld [vmem:[%s4 + $0x14] sm:$0xf]
    %v881 = vld [vmem:[%s4 + $0x18] sm:$0xf]
    %v882 = vld [vmem:[%s4 + $0x1c] sm:$0xf]
    %v883 = vld [vmem:[%s4 + $0x20] sm:$0xf]
    %v884 = vld [vmem:[%s4 + $0x24] sm:$0xf]
    %v885 = vld [vmem:[%s4 + $0x28] sm:$0xf]
    %v886 = vld [vmem:[%s4 + $0x2c] sm:$0xf]
    %v887 = vld [vmem:[%s4 + $0x30] sm:$0xf]
    %v888 = vld [vmem:[%s4 + $0x34] sm:$0xf]
    %v889 = vld [vmem:[%s4 + $0x38] sm:$0xf]
    %v890 = vld [vmem:[%s4 + $0x3c] sm:$0xf]
    %v907 = vunpack.c.l.b16 %v875
    %v908 = vunpack.c.l.b16 %v876
    %v909 = vunpack.c.l.b16 %v877
    %v910 = vunpack.c.l.b16 %v878
    %v911 = vunpack.c.l.b16 %v879
    %v912 = vunpack.c.l.b16 %v880
    %v913 = vunpack.c.l.b16 %v881
    %v914 = vunpack.c.l.b16 %v882
    %v915 = vunpack.c.l.b16 %v883
    %v916 = vunpack.c.l.b16 %v884
    %v917 = vunpack.c.l.b16 %v885
    %v918 = vunpack.c.l.b16 %v886
    %v919 = vunpack.c.l.b16 %v887
    %v920 = vunpack.c.l.b16 %v888
    %v921 = vunpack.c.l.b16 %v889
    %v922 = vunpack.c.l.b16 %v890
    %v923 = vpack.c.b16 %v908, %v907
    %v924 = vpack.c.b16 %v910, %v909
    %v925 = vpack.c.b16 %v912, %v911
    %v926 = vpack.c.b16 %v914, %v913
    %v927 = vpack.c.b16 %v916, %v915
    %v928 = vpack.c.b16 %v918, %v917
    %v929 = vpack.c.b16 %v920, %v919
    %v930 = vpack.c.b16 %v922, %v921
    %939 = vmatprep.subr.bf16.mxu0 0
    %940 = vmatpush1.bf16.msra.mxu0 %v923
    %941 = vmatprep.subr.bf16.mxu0 0
    %942 = vmatpush1.bf16.msra.mxu0 %v924
    %943 = vmatprep.subr.bf16.mxu0 0
    %944 = vmatpush1.bf16.msra.mxu0 %v925
    %945 = vmatprep.subr.bf16.mxu0 0
    %946 = vmatpush1.bf16.msra.mxu0 %v926
    %947 = vmatprep.subr.bf16.mxu0 0
    %948 = vmatpush1.bf16.msra.mxu0 %v927
    %949 = vmatprep.subr.bf16.mxu0 0
    %950 = vmatpush1.bf16.msra.mxu0 %v928
    %951 = vmatprep.subr.bf16.mxu0 0
    %952 = vmatpush1.bf16.msra.mxu0 %v929
    %953 = vmatprep.subr.bf16.mxu0 0
    %954 = vmatpush1.bf16.msra.mxu0 %v930
    %955 = vmatprep.subr.bf16.mxu0 0
    %956 = vmatpush1.bf16.msra.mxu0 0
    %957 = vmatprep.subr.bf16.mxu0 0
    %958 = vmatpush1.bf16.msra.mxu0 0
    %959 = vmatprep.subr.bf16.mxu0 0
    %960 = vmatpush1.bf16.msra.mxu0 0
    %961 = vmatprep.subr.bf16.mxu0 0
    %962 = vmatpush1.bf16.msra.mxu0 0
    %963 = vmatprep.subr.bf16.mxu0 0
    %964 = vmatpush1.bf16.msra.mxu0 0
    %965 = vmatprep.subr.bf16.mxu0 0
    %966 = vmatpush1.bf16.msra.mxu0 0
    %967 = vmatprep.subr.bf16.mxu0 0
    %968 = vmatpush1.bf16.msra.mxu0 0
    %969 = vmatprep.subr.bf16.mxu0 0
    %970 = vmatpush1.bf16.msra.mxu0 0
    %971 = vmatprep.mubr.bf16.mxu0 0
    %972 = vmatmul.mubr.bf16.gmra.mrb[0].mxu0 %v867
    %v973 = vpop.f32.mrb[0].mxu0
    %v974 = vadd.f32 0.0, %v973
    %v975 = vpop.f32.mrb[0].mxu0
    %v976 = vpop.f32.mrb[0].mxu0
    %v977 = vadd.f32 0.0, %v976
    %v978 = vpop.f32.mrb[0].mxu0
    %979 = vmatprep.mubr.bf16.mxu0 0
    %980 = vmatmul.mubr.bf16.gmra.mrb[0].mxu0 %v868
    %v981 = vpop.f32.mrb[0].mxu0
    %v982 = vadd.f32 0.0, %v981
    %v983 = vpop.f32.mrb[0].mxu0
    %v984 = vpop.f32.mrb[0].mxu0
    %v985 = vadd.f32 0.0, %v984
    %v986 = vpop.f32.mrb[0].mxu0
    %987 = vmatprep.mubr.bf16.mxu0 0
    %988 = vmatmul.mubr.bf16.gmra.mrb[0].mxu0 %v869
    %v989 = vpop.f32.mrb[0].mxu0
    %v990 = vadd.f32 0.0, %v989
    %v991 = vpop.f32.mrb[0].mxu0
    %v992 = vpop.f32.mrb[0].mxu0
    %v993 = vadd.f32 0.0, %v992
    %v994 = vpop.f32.mrb[0].mxu0
    %995 = vmatprep.mubr.bf16.mxu0 0
    %996 = vmatmul.mubr.bf16.gmra.mrb[0].mxu0 %v870
    %v997 = vpop.f32.mrb[0].mxu0
    %v998 = vadd.f32 0.0, %v997
    %v999 = vpop.f32.mrb[0].mxu0
    %v1000 = vpop.f32.mrb[0].mxu0
    %v1001 = vadd.f32 0.0, %v1000
    %v1002 = vpop.f32.mrb[0].mxu0
    %1003 = vmatprep.mubr.bf16.mxu0 0
    %1004 = vmatmul.mubr.bf16.gmra.mrb[0].mxu0 %v871
    %v1005 = vpop.f32.mrb[0].mxu0
    %v1006 = vadd.f32 0.0, %v1005
    %v1007 = vpop.f32.mrb[0].mxu0
    %v1008 = vpop.f32.mrb[0].mxu0
    %v1009 = vadd.f32 0.0, %v1008
    %v1010 = vpop.f32.mrb[0].mxu0
    %1011 = vmatprep.mubr.bf16.mxu0 0
    %1012 = vmatmul.mubr.bf16.gmra.mrb[0].mxu0 %v872
    %v1013 = vpop.f32.mrb[0].mxu0
    %v1014 = vadd.f32 0.0, %v1013
    %v1015 = vpop.f32.mrb[0].mxu0
    %v1016 = vpop.f32.mrb[0].mxu0
    %v1017 = vadd.f32 0.0, %v1016
    %v1018 = vpop.f32.mrb[0].mxu0
    %1019 = vmatprep.mubr.bf16.mxu0 0
    %1020 = vmatmul.mubr.bf16.gmra.mrb[0].mxu0 %v873
    %v1021 = vpop.f32.mrb[0].mxu0
    %v1022 = vadd.f32 0.0, %v1021
    %v1023 = vpop.f32.mrb[0].mxu0
    %v1024 = vpop.f32.mrb[0].mxu0
    %v1025 = vadd.f32 0.0, %v1024
    %v1026 = vpop.f32.mrb[0].mxu0
    %1027 = vmatprep.mubr.bf16.mxu0 0
    %1028 = vmatmul.mubr.bf16.gmra.mrb[0].mxu0 %v874
    %v1029 = vpop.f32.mrb[0].mxu0
    %v1030 = vadd.f32 0.0, %v1029
    %v1031 = vpop.f32.mrb[0].mxu0
    %v1032 = vpop.f32.mrb[0].mxu0
    %v1033 = vadd.f32 0.0, %v1032
    %v1034 = vpop.f32.mrb[0].mxu0
    %1035 = vdwg.mxu0
    %v1036 = vmul.f32 %v289, %v974
    %v1037 = vmul.f32 %v294, %v977
    %v1038 = vmul.f32 %v299, %v982
    %v1039 = vmul.f32 %v304, %v985
    %v1040 = vmul.f32 %v309, %v990
    %v1041 = vmul.f32 %v314, %v993
    %v1042 = vmul.f32 %v319, %v998
    %v1043 = vmul.f32 %v324, %v1001
    %v1044 = vmul.f32 %v329, %v1006
    %v1045 = vmul.f32 %v334, %v1009
    %v1046 = vmul.f32 %v339, %v1014
    %v1047 = vmul.f32 %v344, %v1017
    %v1048 = vmul.f32 %v349, %v1022
    %v1049 = vmul.f32 %v354, %v1025
    %v1050 = vmul.f32 %v359, %v1030
    %v1051 = vmul.f32 %v364, %v1033
    %v1052 = vpack.c.bf16 %v1037, %v1036
    %v1053 = vpack.c.bf16 %v1039, %v1038
    %v1054 = vpack.c.bf16 %v1041, %v1040
    %v1055 = vpack.c.bf16 %v1043, %v1042
    %v1056 = vpack.c.bf16 %v1045, %v1044
    %v1057 = vpack.c.bf16 %v1047, %v1046
    %v1058 = vpack.c.bf16 %v1049, %v1048
    %v1059 = vpack.c.bf16 %v1051, %v1050
    %1060 = vmatprep.subr.bf16.mxu0 0
    %1061 = vmatpush1.bf16.msra.mxu0 %v1052
    %1062 = vmatprep.subr.bf16.mxu0 0
    %1063 = vmatpush1.bf16.msra.mxu0 %v1053
    %1064 = vmatprep.subr.bf16.mxu0 0
    %1065 = vmatpush1.bf16.msra.mxu0 %v1054
    %1066 = vmatprep.subr.bf16.mxu0 0
    %1067 = vmatpush1.bf16.msra.mxu0 %v1055
    %1068 = vmatprep.subr.bf16.mxu0 0
    %1069 = vmatpush1.bf16.msra.mxu0 %v1056
    %1070 = vmatprep.subr.bf16.mxu0 0
    %1071 = vmatpush1.bf16.msra.mxu0 %v1057
    %1072 = vmatprep.subr.bf16.mxu0 0
    %1073 = vmatpush1.bf16.msra.mxu0 %v1058
    %1074 = vmatprep.subr.bf16.mxu0 0
    %1075 = vmatpush1.bf16.msra.mxu0 %v1059
    %1076 = vmatprep.subr.bf16.mxu0 0
    %1077 = vmatpush1.bf16.msra.mxu0 0
    %1078 = vmatprep.subr.bf16.mxu0 0
    %1079 = vmatpush1.bf16.msra.mxu0 0
    %1080 = vmatprep.subr.bf16.mxu0 0
    %1081 = vmatpush1.bf16.msra.mxu0 0
    %1082 = vmatprep.subr.bf16.mxu0 0
    %1083 = vmatpush1.bf16.msra.mxu0 0
    %1084 = vmatprep.subr.bf16.mxu0 0
    %1085 = vmatpush1.bf16.msra.mxu0 0
    %1086 = vmatprep.subr.bf16.mxu0 0
    %1087 = vmatpush1.bf16.msra.mxu0 0
    %1088 = vmatprep.subr.bf16.mxu0 0
    %1089 = vmatpush1.bf16.msra.mxu0 0
    %1090 = vmatprep.subr.bf16.mxu0 0
    %1091 = vmatpush1.bf16.msra.mxu0 0
    %1092 = vmatprep.mubr.bf16.mxu0 0
    %1093 = vmatmul.mubr.bf16.gmra.mrb[0].mxu0 %v422
    %v1094 = vpop.f32.mrb[0].mxu0
    %v1095 = vadd.f32 0.0, %v1094
    %v1096 = vpop.f32.mrb[0].mxu0
    %v1097 = vpop.f32.mrb[0].mxu0
    %v1098 = vadd.f32 0.0, %v1097
    %v1099 = vpop.f32.mrb[0].mxu0
    %1100 = vmatprep.mubr.bf16.mxu0 0
    %1101 = vmatmul.mubr.bf16.gmra.mrb[0].mxu0 %v423
    %v1102 = vpop.f32.mrb[0].mxu0
    %v1103 = vadd.f32 0.0, %v1102
    %v1104 = vpop.f32.mrb[0].mxu0
    %v1105 = vpop.f32.mrb[0].mxu0
    %v1106 = vadd.f32 0.0, %v1105
    %v1107 = vpop.f32.mrb[0].mxu0
    %1108 = vmatprep.mubr.bf16.mxu0 0
    %1109 = vmatmul.mubr.bf16.gmra.mrb[0].mxu0 %v424
    %v1110 = vpop.f32.mrb[0].mxu0
    %v1111 = vadd.f32 0.0, %v1110
    %v1112 = vpop.f32.mrb[0].mxu0
    %v1113 = vpop.f32.mrb[0].mxu0
    %v1114 = vadd.f32 0.0, %v1113
    %v1115 = vpop.f32.mrb[0].mxu0
    %1116 = vmatprep.mubr.bf16.mxu0 0
    %1117 = vmatmul.mubr.bf16.gmra.mrb[0].mxu0 %v425
    %v1118 = vpop.f32.mrb[0].mxu0
    %v1119 = vadd.f32 0.0, %v1118
    %v1120 = vpop.f32.mrb[0].mxu0
    %v1121 = vpop.f32.mrb[0].mxu0
    %v1122 = vadd.f32 0.0, %v1121
    %v1123 = vpop.f32.mrb[0].mxu0
    %1124 = vmatprep.mubr.bf16.mxu0 0
    %1125 = vmatmul.mubr.bf16.gmra.mrb[0].mxu0 %v426
    %v1126 = vpop.f32.mrb[0].mxu0
    %v1127 = vadd.f32 0.0, %v1126
    %v1128 = vpop.f32.mrb[0].mxu0
    %v1129 = vpop.f32.mrb[0].mxu0
    %v1130 = vadd.f32 0.0, %v1129
    %v1131 = vpop.f32.mrb[0].mxu0
    %1132 = vmatprep.mubr.bf16.mxu0 0
    %1133 = vmatmul.mubr.bf16.gmra.mrb[0].mxu0 %v427
    %v1134 = vpop.f32.mrb[0].mxu0
    %v1135 = vadd.f32 0.0, %v1134
    %v1136 = vpop.f32.mrb[0].mxu0
    %v1137 = vpop.f32.mrb[0].mxu0
    %v1138 = vadd.f32 0.0, %v1137
    %v1139 = vpop.f32.mrb[0].mxu0
    %1140 = vmatprep.mubr.bf16.mxu0 0
    %1141 = vmatmul.mubr.bf16.gmra.mrb[0].mxu0 %v428
    %v1142 = vpop.f32.mrb[0].mxu0
    %v1143 = vadd.f32 0.0, %v1142
    %v1144 = vpop.f32.mrb[0].mxu0
    %v1145 = vpop.f32.mrb[0].mxu0
    %v1146 = vadd.f32 0.0, %v1145
    %v1147 = vpop.f32.mrb[0].mxu0
    %1148 = vmatprep.mubr.bf16.mxu0 0
    %1149 = vmatmul.mubr.bf16.gmra.mrb[0].mxu0 %v429
    %v1150 = vpop.f32.mrb[0].mxu0
    %v1151 = vadd.f32 0.0, %v1150
    %v1152 = vpop.f32.mrb[0].mxu0
    %v1153 = vpop.f32.mrb[0].mxu0
    %v1154 = vadd.f32 0.0, %v1153
    %v1155 = vpop.f32.mrb[0].mxu0
    %1156 = vdwg.mxu0
    %v1157 = vmul.f32 %v289, %v1095
    %v1158 = vmul.f32 %v294, %v1098
    %v1159 = vmul.f32 %v299, %v1103
    %v1160 = vmul.f32 %v304, %v1106
    %v1161 = vmul.f32 %v309, %v1111
    %v1162 = vmul.f32 %v314, %v1114
    %v1163 = vmul.f32 %v319, %v1119
    %v1164 = vmul.f32 %v324, %v1122
    %v1165 = vmul.f32 %v329, %v1127
    %v1166 = vmul.f32 %v334, %v1130
    %v1167 = vmul.f32 %v339, %v1135
    %v1168 = vmul.f32 %v344, %v1138
    %v1169 = vmul.f32 %v349, %v1143
    %v1170 = vmul.f32 %v354, %v1146
    %v1171 = vmul.f32 %v359, %v1151
    %v1172 = vmul.f32 %v364, %v1154
    %v1173 = vlaneseq
    %v1174 = vshrl.u32 %v1173, 7
    %v1175 = vsub.s32 3, %v1174
    %v1176 = vrot.slane %v60, %v1175
    %v1177 = vadd.f32 %v1157, %v1176
    %v1178 = vadd.f32 %v1158, %v1176
    %v1179 = vadd.f32 %v1159, %v1176
    %v1180 = vadd.f32 %v1160, %v1176
    %v1181 = vadd.f32 %v1161, %v1176
    %v1182 = vadd.f32 %v1162, %v1176
    %v1183 = vadd.f32 %v1163, %v1176
    %v1184 = vadd.f32 %v1164, %v1176
    %v1185 = vadd.f32 %v1165, %v1176
    %v1186 = vadd.f32 %v1166, %v1176
    %v1187 = vadd.f32 %v1167, %v1176
    %v1188 = vadd.f32 %v1168, %v1176
    %v1189 = vadd.f32 %v1169, %v1176
    %v1190 = vadd.f32 %v1170, %v1176
    %v1191 = vadd.f32 %v1171, %v1176
    %v1192 = vadd.f32 %v1172, %v1176
    %1193 = vadd.xlane.f32.xlu0 %v1177
    %v1194 = vpop.xlane.xlu0 %1193
    %1195 = vadd.xlane.f32.xlu0 %v1178
    %v1196 = vpop.xlane.xlu0 %1195
    %1197 = vadd.xlane.f32.xlu0 %v1179
    %v1198 = vpop.xlane.xlu0 %1197
    %1199 = vadd.xlane.f32.xlu0 %v1180
    %v1200 = vpop.xlane.xlu0 %1199
    %1201 = vadd.xlane.f32.xlu0 %v1181
    %v1202 = vpop.xlane.xlu0 %1201
    %1203 = vadd.xlane.f32.xlu0 %v1182
    %v1204 = vpop.xlane.xlu0 %1203
    %1205 = vadd.xlane.f32.xlu0 %v1183
    %v1206 = vpop.xlane.xlu0 %1205
    %1207 = vadd.xlane.f32.xlu0 %v1184
    %v1208 = vpop.xlane.xlu0 %1207
    %1209 = vadd.xlane.f32.xlu0 %v1185
    %v1210 = vpop.xlane.xlu0 %1209
    %1211 = vadd.xlane.f32.xlu0 %v1186
    %v1212 = vpop.xlane.xlu0 %1211
    %1213 = vadd.xlane.f32.xlu0 %v1187
    %v1214 = vpop.xlane.xlu0 %1213
    %1215 = vadd.xlane.f32.xlu0 %v1188
    %v1216 = vpop.xlane.xlu0 %1215
    %1217 = vadd.xlane.f32.xlu0 %v1189
    %v1218 = vpop.xlane.xlu0 %1217
    %1219 = vadd.xlane.f32.xlu0 %v1190
    %v1220 = vpop.xlane.xlu0 %1219
    %1221 = vadd.xlane.f32.xlu0 %v1191
    %v1222 = vpop.xlane.xlu0 %1221
    %1223 = vadd.xlane.f32.xlu0 %v1192
    %v1224 = vpop.xlane.xlu0 %1223
    %v1225 = vmul.f32 %v1194, 0.03125
    %v1226 = vmul.f32 %v1196, 0.03125
    %v1227 = vmul.f32 %v1198, 0.03125
    %v1228 = vmul.f32 %v1200, 0.03125
    %v1229 = vmul.f32 %v1202, 0.03125
    %v1230 = vmul.f32 %v1204, 0.03125
    %v1231 = vmul.f32 %v1206, 0.03125
    %v1232 = vmul.f32 %v1208, 0.03125
    %v1233 = vmul.f32 %v1210, 0.03125
    %v1234 = vmul.f32 %v1212, 0.03125
    %v1235 = vmul.f32 %v1214, 0.03125
    %v1236 = vmul.f32 %v1216, 0.03125
    %v1237 = vmul.f32 %v1218, 0.03125
    %v1238 = vmul.f32 %v1220, 0.03125
    %v1239 = vmul.f32 %v1222, 0.03125
    %v1240 = vmul.f32 %v1224, 0.03125
    %v1241 = vmul.f32 %v1177, %v1177
    %v1242 = vmul.f32 %v1178, %v1178
    %v1243 = vmul.f32 %v1179, %v1179
    %v1244 = vmul.f32 %v1180, %v1180
    %v1245 = vmul.f32 %v1181, %v1181
    %v1246 = vmul.f32 %v1182, %v1182
    %v1247 = vmul.f32 %v1183, %v1183
    %v1248 = vmul.f32 %v1184, %v1184
    %v1249 = vmul.f32 %v1185, %v1185
    %v1250 = vmul.f32 %v1186, %v1186
    %v1251 = vmul.f32 %v1187, %v1187
    %v1252 = vmul.f32 %v1188, %v1188
    %v1253 = vmul.f32 %v1189, %v1189
    %v1254 = vmul.f32 %v1190, %v1190
    %v1255 = vmul.f32 %v1191, %v1191
    %v1256 = vmul.f32 %v1192, %v1192
    %1257 = vadd.xlane.f32.xlu0 %v1241
    %v1258 = vpop.xlane.xlu0 %1257
    %1259 = vadd.xlane.f32.xlu0 %v1242
    %v1260 = vpop.xlane.xlu0 %1259
    %1261 = vadd.xlane.f32.xlu0 %v1243
    %v1262 = vpop.xlane.xlu0 %1261
    %1263 = vadd.xlane.f32.xlu0 %v1244
    %v1264 = vpop.xlane.xlu0 %1263
    %1265 = vadd.xlane.f32.xlu0 %v1245
    %v1266 = vpop.xlane.xlu0 %1265
    %1267 = vadd.xlane.f32.xlu0 %v1246
    %v1268 = vpop.xlane.xlu0 %1267
    %1269 = vadd.xlane.f32.xlu0 %v1247
    %v1270 = vpop.xlane.xlu0 %1269
    %1271 = vadd.xlane.f32.xlu0 %v1248
    %v1272 = vpop.xlane.xlu0 %1271
    %1273 = vadd.xlane.f32.xlu0 %v1249
    %v1274 = vpop.xlane.xlu0 %1273
    %1275 = vadd.xlane.f32.xlu0 %v1250
    %v1276 = vpop.xlane.xlu0 %1275
    %1277 = vadd.xlane.f32.xlu0 %v1251
    %v1278 = vpop.xlane.xlu0 %1277
    %1279 = vadd.xlane.f32.xlu0 %v1252
    %v1280 = vpop.xlane.xlu0 %1279
    %1281 = vadd.xlane.f32.xlu0 %v1253
    %v1282 = vpop.xlane.xlu0 %1281
    %1283 = vadd.xlane.f32.xlu0 %v1254
    %v1284 = vpop.xlane.xlu0 %1283
    %1285 = vadd.xlane.f32.xlu0 %v1255
    %v1286 = vpop.xlane.xlu0 %1285
    %1287 = vadd.xlane.f32.xlu0 %v1256
    %v1288 = vpop.xlane.xlu0 %1287
    %v1289 = vmul.f32 %v1258, 0.03125
    %v1290 = vmul.f32 %v1260, 0.03125
    %v1291 = vmul.f32 %v1262, 0.03125
    %v1292 = vmul.f32 %v1264, 0.03125
    %v1293 = vmul.f32 %v1266, 0.03125
    %v1294 = vmul.f32 %v1268, 0.03125
    %v1295 = vmul.f32 %v1270, 0.03125
    %v1296 = vmul.f32 %v1272, 0.03125
    %v1297 = vmul.f32 %v1274, 0.03125
    %v1298 = vmul.f32 %v1276, 0.03125
    %v1299 = vmul.f32 %v1278, 0.03125
    %v1300 = vmul.f32 %v1280, 0.03125
    %v1301 = vmul.f32 %v1282, 0.03125
    %v1302 = vmul.f32 %v1284, 0.03125
    %v1303 = vmul.f32 %v1286, 0.03125
    %v1304 = vmul.f32 %v1288, 0.03125
    %v1305 = vmul.f32 %v1225, %v1225
    %v1306 = vmul.f32 %v1226, %v1226
    %v1307 = vmul.f32 %v1227, %v1227
    %v1308 = vmul.f32 %v1228, %v1228
    %v1309 = vmul.f32 %v1229, %v1229
    %v1310 = vmul.f32 %v1230, %v1230
    %v1311 = vmul.f32 %v1231, %v1231
    %v1312 = vmul.f32 %v1232, %v1232
    %v1313 = vmul.f32 %v1233, %v1233
    %v1314 = vmul.f32 %v1234, %v1234
    %v1315 = vmul.f32 %v1235, %v1235
    %v1316 = vmul.f32 %v1236, %v1236
    %v1317 = vmul.f32 %v1237, %v1237
    %v1318 = vmul.f32 %v1238, %v1238
    %v1319 = vmul.f32 %v1239, %v1239
    %v1320 = vmul.f32 %v1240, %v1240
    %v1321 = vsub.f32 %v1289, %v1305
    %v1322 = vsub.f32 %v1290, %v1306
    %v1323 = vsub.f32 %v1291, %v1307
    %v1324 = vsub.f32 %v1292, %v1308
    %v1325 = vsub.f32 %v1293, %v1309
    %v1326 = vsub.f32 %v1294, %v1310
    %v1327 = vsub.f32 %v1295, %v1311
    %v1328 = vsub.f32 %v1296, %v1312
    %v1329 = vsub.f32 %v1297, %v1313
    %v1330 = vsub.f32 %v1298, %v1314
    %v1331 = vsub.f32 %v1299, %v1315
    %v1332 = vsub.f32 %v1300, %v1316
    %v1333 = vsub.f32 %v1301, %v1317
    %v1334 = vsub.f32 %v1302, %v1318
    %v1335 = vsub.f32 %v1303, %v1319
    %v1336 = vsub.f32 %v1304, %v1320
    %v1337 = vsub.f32 %v1177, %v1225
    %v1338 = vsub.f32 %v1178, %v1226
    %v1339 = vsub.f32 %v1179, %v1227
    %v1340 = vsub.f32 %v1180, %v1228
    %v1341 = vsub.f32 %v1181, %v1229
    %v1342 = vsub.f32 %v1182, %v1230
    %v1343 = vsub.f32 %v1183, %v1231
    %v1344 = vsub.f32 %v1184, %v1232
    %v1345 = vsub.f32 %v1185, %v1233
    %v1346 = vsub.f32 %v1186, %v1234
    %v1347 = vsub.f32 %v1187, %v1235
    %v1348 = vsub.f32 %v1188, %v1236
    %v1349 = vsub.f32 %v1189, %v1237
    %v1350 = vsub.f32 %v1190, %v1238
    %v1351 = vsub.f32 %v1191, %v1239
    %v1352 = vsub.f32 %v1192, %v1240
    %v1353 = vadd.f32 %v1321, 1e-05
    %v1354 = vadd.f32 %v1322, 1e-05
    %v1355 = vadd.f32 %v1323, 1e-05
    %v1356 = vadd.f32 %v1324, 1e-05
    %v1357 = vadd.f32 %v1325, 1e-05
    %v1358 = vadd.f32 %v1326, 1e-05
    %v1359 = vadd.f32 %v1327, 1e-05
    %v1360 = vadd.f32 %v1328, 1e-05
    %v1361 = vadd.f32 %v1329, 1e-05
    %v1362 = vadd.f32 %v1330, 1e-05
    %v1363 = vadd.f32 %v1331, 1e-05
    %v1364 = vadd.f32 %v1332, 1e-05
    %v1365 = vadd.f32 %v1333, 1e-05
    %v1366 = vadd.f32 %v1334, 1e-05
    %v1367 = vadd.f32 %v1335, 1e-05
    %v1368 = vadd.f32 %v1336, 1e-05
    %v1369 = vrsqrt.pop %v1353
    %v1370 = vrsqrt.pop %v1354
    %v1371 = vrsqrt.pop %v1355
    %v1372 = vrsqrt.pop %v1356
    %v1373 = vrsqrt.pop %v1357
    %v1374 = vrsqrt.pop %v1358
    %v1375 = vrsqrt.pop %v1359
    %v1376 = vrsqrt.pop %v1360
    %v1377 = vrsqrt.pop %v1361
    %v1378 = vrsqrt.pop %v1362
    %v1379 = vrsqrt.pop %v1363
    %v1380 = vrsqrt.pop %v1364
    %v1381 = vrsqrt.pop %v1365
    %v1382 = vrsqrt.pop %v1366
    %v1383 = vrsqrt.pop %v1367
    %v1384 = vrsqrt.pop %v1368
    %v1385 = vmul.f32 %v1337, %v1369
    %v1386 = vmul.f32 %v1338, %v1370
    %v1387 = vmul.f32 %v1339, %v1371
    %v1388 = vmul.f32 %v1340, %v1372
    %v1389 = vmul.f32 %v1341, %v1373
    %v1390 = vmul.f32 %v1342, %v1374
    %v1391 = vmul.f32 %v1343, %v1375
    %v1392 = vmul.f32 %v1344, %v1376
    %v1393 = vmul.f32 %v1345, %v1377
    %v1394 = vmul.f32 %v1346, %v1378
    %v1395 = vmul.f32 %v1347, %v1379
    %v1396 = vmul.f32 %v1348, %v1380
    %v1397 = vmul.f32 %v1349, %v1381
    %v1398 = vmul.f32 %v1350, %v1382
    %v1399 = vmul.f32 %v1351, %v1383
    %v1400 = vmul.f32 %v1352, %v1384
    %v1401 = vlaneseq
    %v1402 = vshrl.u32 %v1401, 7
    %v1403 = vsub.s32 4, %v1402
    %v1404 = vrot.slane %v60, %v1403
    %v1405 = vmul.f32 %v1385, %v1404
    %v1406 = vmul.f32 %v1386, %v1404
    %v1407 = vmul.f32 %v1387, %v1404
    %v1408 = vmul.f32 %v1388, %v1404
    %v1409 = vmul.f32 %v1389, %v1404
    %v1410 = vmul.f32 %v1390, %v1404
    %v1411 = vmul.f32 %v1391, %v1404
    %v1412 = vmul.f32 %v1392, %v1404
    %v1413 = vmul.f32 %v1393, %v1404
    %v1414 = vmul.f32 %v1394, %v1404
    %v1415 = vmul.f32 %v1395, %v1404
    %v1416 = vmul.f32 %v1396, %v1404
    %v1417 = vmul.f32 %v1397, %v1404
    %v1418 = vmul.f32 %v1398, %v1404
    %v1419 = vmul.f32 %v1399, %v1404
    %v1420 = vmul.f32 %v1400, %v1404
    %v1421 = vlaneseq
    %v1422 = vshrl.u32 %v1421, 7
    %v1423 = vsub.s32 5, %v1422
    %v1424 = vrot.slane %v60, %v1423
    %v1425 = vadd.f32 %v1405, %v1424
    %v1426 = vadd.f32 %v1406, %v1424
    %v1427 = vadd.f32 %v1407, %v1424
    %v1428 = vadd.f32 %v1408, %v1424
    %v1429 = vadd.f32 %v1409, %v1424
    %v1430 = vadd.f32 %v1410, %v1424
    %v1431 = vadd.f32 %v1411, %v1424
    %v1432 = vadd.f32 %v1412, %v1424
    %v1433 = vadd.f32 %v1413, %v1424
    %v1434 = vadd.f32 %v1414, %v1424
    %v1435 = vadd.f32 %v1415, %v1424
    %v1436 = vadd.f32 %v1416, %v1424
    %v1437 = vadd.f32 %v1417, %v1424
    %v1438 = vadd.f32 %v1418, %v1424
    %v1439 = vadd.f32 %v1419, %v1424
    %v1440 = vadd.f32 %v1420, %v1424
    %vm1441 = vcmp.gt.f32.partialorder %v1425, 0.0
    %vm1442 = vcmp.gt.f32.partialorder %v1426, 0.0
    %vm1443 = vcmp.gt.f32.partialorder %v1427, 0.0
    %vm1444 = vcmp.gt.f32.partialorder %v1428, 0.0
    %vm1445 = vcmp.gt.f32.partialorder %v1429, 0.0
    %vm1446 = vcmp.gt.f32.partialorder %v1430, 0.0
    %vm1447 = vcmp.gt.f32.partialorder %v1431, 0.0
    %vm1448 = vcmp.gt.f32.partialorder %v1432, 0.0
    %vm1449 = vcmp.gt.f32.partialorder %v1433, 0.0
    %vm1450 = vcmp.gt.f32.partialorder %v1434, 0.0
    %vm1451 = vcmp.gt.f32.partialorder %v1435, 0.0
    %vm1452 = vcmp.gt.f32.partialorder %v1436, 0.0
    %vm1453 = vcmp.gt.f32.partialorder %v1437, 0.0
    %vm1454 = vcmp.gt.f32.partialorder %v1438, 0.0
    %vm1455 = vcmp.gt.f32.partialorder %v1439, 0.0
    %vm1456 = vcmp.gt.f32.partialorder %v1440, 0.0
    %v1457 = vmul.f32 %v1425, 0.01
    %v1458 = vmul.f32 %v1426, 0.01
    %v1459 = vmul.f32 %v1427, 0.01
    %v1460 = vmul.f32 %v1428, 0.01
    %v1461 = vmul.f32 %v1429, 0.01
    %v1462 = vmul.f32 %v1430, 0.01
    %v1463 = vmul.f32 %v1431, 0.01
    %v1464 = vmul.f32 %v1432, 0.01
    %v1465 = vmul.f32 %v1433, 0.01
    %v1466 = vmul.f32 %v1434, 0.01
    %v1467 = vmul.f32 %v1435, 0.01
    %v1468 = vmul.f32 %v1436, 0.01
    %v1469 = vmul.f32 %v1437, 0.01
    %v1470 = vmul.f32 %v1438, 0.01
    %v1471 = vmul.f32 %v1439, 0.01
    %v1472 = vmul.f32 %v1440, 0.01
    %v1473 = vsel %vm1441, %v1425, %v1457
    %v1474 = vsel %vm1442, %v1426, %v1458
    %v1475 = vsel %vm1443, %v1427, %v1459
    %v1476 = vsel %vm1444, %v1428, %v1460
    %v1477 = vsel %vm1445, %v1429, %v1461
    %v1478 = vsel %vm1446, %v1430, %v1462
    %v1479 = vsel %vm1447, %v1431, %v1463
    %v1480 = vsel %vm1448, %v1432, %v1464
    %v1481 = vsel %vm1449, %v1433, %v1465
    %v1482 = vsel %vm1450, %v1434, %v1466
    %v1483 = vsel %vm1451, %v1435, %v1467
    %v1484 = vsel %vm1452, %v1436, %v1468
    %v1485 = vsel %vm1453, %v1437, %v1469
    %v1486 = vsel %vm1454, %v1438, %v1470
    %v1487 = vsel %vm1455, %v1439, %v1471
    %v1488 = vsel %vm1456, %v1440, %v1472
    %v1489 = vld [vmem:[%s6] sm:$0xf]
    %v1490 = vld [vmem:[%s6 + $0x4] sm:$0xf]
    %v1491 = vunpack.c.l.bf16 %v1489
    %v1492 = vunpack.c.l.bf16 %v1490
    %1493 = vadd.xlane.f32.xlu0 %v1491
    %v1494 = vpop.xlane.xlu0 %1493
    %1495 = vadd.xlane.f32.xlu0 %v1492
    %v1496 = vpop.xlane.xlu0 %1495
    %v1497 = vmax.f32 %v1494, 1.0
    %v1498 = vmax.f32 %v1496, 1.0
    %v1499 = vrcp.pop %v1497
    %v1500 = vmul.f32 1.0, %v1499
    %v1501 = vrcp.pop %v1498
    %v1502 = vmul.f32 1.0, %v1501
    %v1503 = vpack.c.bf16 %v1474, %v1473
    %v1504 = vpack.c.bf16 %v1476, %v1475
    %v1505 = vpack.c.bf16 %v1478, %v1477
    %v1506 = vpack.c.bf16 %v1480, %v1479
    %v1507 = vpack.c.bf16 %v1482, %v1481
    %v1508 = vpack.c.bf16 %v1484, %v1483
    %v1509 = vpack.c.bf16 %v1486, %v1485
    %v1510 = vpack.c.bf16 %v1488, %v1487
    %v1513 = vunpack.c.l.b16 %v1489
    %v1514 = vunpack.c.l.b16 %v1490
    %v1515 = vpack.c.b16 %v1514, %v1513
    %1517 = vmatprep.subr.bf16.mxu0 0
    %1518 = vmatpush1.bf16.msra.mxu0 %v1503
    %1519 = vmatprep.subr.bf16.mxu0 0
    %1520 = vmatpush1.bf16.msra.mxu0 %v1504
    %1521 = vmatprep.subr.bf16.mxu0 0
    %1522 = vmatpush1.bf16.msra.mxu0 %v1505
    %1523 = vmatprep.subr.bf16.mxu0 0
    %1524 = vmatpush1.bf16.msra.mxu0 %v1506
    %1525 = vmatprep.subr.bf16.mxu0 0
    %1526 = vmatpush1.bf16.msra.mxu0 %v1507
    %1527 = vmatprep.subr.bf16.mxu0 0
    %1528 = vmatpush1.bf16.msra.mxu0 %v1508
    %1529 = vmatprep.subr.bf16.mxu0 0
    %1530 = vmatpush1.bf16.msra.mxu0 %v1509
    %1531 = vmatprep.subr.bf16.mxu0 0
    %1532 = vmatpush1.bf16.msra.mxu0 %v1510
    %1533 = vmatprep.subr.bf16.mxu0 0
    %1534 = vmatpush1.bf16.msra.mxu0 0
    %1535 = vmatprep.subr.bf16.mxu0 0
    %1536 = vmatpush1.bf16.msra.mxu0 0
    %1537 = vmatprep.subr.bf16.mxu0 0
    %1538 = vmatpush1.bf16.msra.mxu0 0
    %1539 = vmatprep.subr.bf16.mxu0 0
    %1540 = vmatpush1.bf16.msra.mxu0 0
    %1541 = vmatprep.subr.bf16.mxu0 0
    %1542 = vmatpush1.bf16.msra.mxu0 0
    %1543 = vmatprep.subr.bf16.mxu0 0
    %1544 = vmatpush1.bf16.msra.mxu0 0
    %1545 = vmatprep.subr.bf16.mxu0 0
    %1546 = vmatpush1.bf16.msra.mxu0 0
    %1547 = vmatprep.subr.bf16.mxu0 0
    %1548 = vmatpush1.bf16.msra.mxu0 0
    %1549 = vmatprep.mubr.bf16.mxu0 0
    %1550 = vmatmul.mubr.bf16.gmra.mrb[0].mxu0 %v1515
    %v1551 = vpop.f32.mrb[0].mxu0
    %v1552 = vadd.f32 0.0, %v1551
    %v1553 = vpop.f32.mrb[0].mxu0
    %v1554 = vpop.f32.mrb[0].mxu0
    %v1555 = vadd.f32 0.0, %v1554
    %v1556 = vpop.f32.mrb[0].mxu0
    %1557 = vdwg.mxu0
    %v1558 = vmul.f32 %v1552, %v1500
    %v1559 = vmul.f32 %v1555, %v1502
    %1560 = vst [vmem:[#allocation2] sm:$0xff] %v1558
    %1561 = vst [vmem:[#allocation2 + $0x8] sm:$0xff] %v1559
    // Predicated region
    $region30: #{team_gnn_forward.1} parent=1 // pred_check
      _
    $region31: #{team_gnn_forward.1} parent=1 // pred_check_branch
      %1563 = sbr.rel (0) target = $region33
    $region32: #{team_gnn_forward.1} parent=1 // pred_region
      %s1565 = ssub.s32 256, 256
      %1566 = vsyncadd [#allocation3], %s1565
      %s1567 = sshll.u32 [#allocation2], 4
      %s1568 = int_to_ptr.vmem [resolvable:$true] %s1567
      %1573 = dma.vmem_to_hbm [thread:$0]  %s1568, 256, %s7, [#allocation3], 128, 128, 8
    $region33: #{team_gnn_forward.1} parent=1 // pred_fallthru
      _
    // Predicated region
    $region34: #{team_gnn_forward.1} parent=1 // pred_check
      _
    $region35: #{team_gnn_forward.1} parent=1 // pred_check_branch
      %1575 = sbr.rel (0) target = $region37
    $region36: #{team_gnn_forward.1} parent=1 // pred_region
      %1576 = dma.done [#allocation3], 256
    $region37: #{team_gnn_forward.1} parent=1 // pred_fallthru
      _
    %1577 = vsyncpa [#allocation3], 1

</llo_original>
